<compile_context>
chip_gen: v7x
topology: tpu7x:2x2x1
jax: 0.10.0
libtpu: 0.0.40
codegen_flags: <defaults>
</compile_context>

<pallas_src>
import functools

import jax
import jax.numpy as jnp
from jax.experimental import pallas as pl
from jax.experimental.pallas import tpu as pltpu


def convlstm_cell_kernel(xh_ref, c_ref, masks_ref, w_ref, pw_ref,
                         h_out_ref, c_out_ref, slab_ref, acc_ref,
                         *, hidden, k, dil, width, cp, chunk, bf16_gates):
    # xh_ref    : (1, Cp, L)   bf16  row-padded, flattened [x ; h]
    # c_ref     : (1, Ch, HW)  f32   previous cell state (channels-major)
    # masks_ref : (K, HW)      bf16  W-edge zero-padding masks per column tap
    # w_ref     : (4Ch, KKp)   bf16  flattened conv weight + bias column
    # pw_ref    : (Ch, 3)      f32   peephole weights, columns = [i, f, o]
    # h_out_ref : (1, Ch, HW)  bf16
    # c_out_ref : (1, Ch, HW)  f32
    # slab_ref  : (KKp, HW)    bf16  VMEM scratch (im2col slab)
    # acc_ref   : (4Ch, HW)    f32   VMEM scratch (matmul accumulator)
    T = c_ref.shape[-1]
    kk_cp = k * k * cp
    kkp = slab_ref.shape[0]

    # ---- build the im2col slab in VMEM (static slices only) ----------------
    for kh in range(k):
        for kw in range(k):
            start = kh * dil * width + kw * dil            # static Python int
            tap = xh_ref[0, :, start:start + T] * masks_ref[kw:kw + 1, :]
            t = kh * k + kw
            slab_ref[t * cp:(t + 1) * cp, :] = tap

    # Bias row (constant 1) followed by a zero tail so the padded contraction
    # rows never contain uninitialized VMEM.
    row = jax.lax.broadcasted_iota(jnp.int32, (kkp - kk_cp, T), 0)
    slab_ref[kk_cp:, :] = jnp.where(row == 0, 1.0, 0.0).astype(jnp.bfloat16)

    # ---- one deep MXU matmul (bf16 operands, f32 accumulation) -------------
    acc_ref[...] = jnp.dot(w_ref[...], slab_ref[...],
                           preferred_element_type=jnp.float32)

    # ---- gate math in 128-lane chunks (low vreg pressure) ------------------
    wi = pw_ref[:, 0:1]
    wf = pw_ref[:, 1:2]
    wo = pw_ref[:, 2:3]
    for s0 in range(0, T, chunk):
        sl = slice(s0, s0 + chunk)
        # Gate order matches torch.split of the conv output: [i, f, o, g].
        # Sublane slices at multiples of 8 -> vreg-aligned, free.
        ai = acc_ref[0 * hidden:1 * hidden, sl]
        af = acc_ref[1 * hidden:2 * hidden, sl]
        ao = acc_ref[2 * hidden:3 * hidden, sl]
        ag = acc_ref[3 * hidden:4 * hidden, sl]
        c_prev = c_ref[0, :, sl]                            # f32

        pre_i = ai + c_prev * wi
        pre_f = af + c_prev * wf
        pre_o = ao + c_prev * wo                            # o-gate uses OLD c
        if bf16_gates:
            # bf16 transcendentals (v6e/v7x EUP/VPU are bf16-capable).
            gi = jax.nn.sigmoid(pre_i.astype(jnp.bfloat16))
            gf = jax.nn.sigmoid(pre_f.astype(jnp.bfloat16))
            go = jax.nn.sigmoid(pre_o.astype(jnp.bfloat16))
            gg = jnp.tanh(ag.astype(jnp.bfloat16))
        else:
            gi = jax.nn.sigmoid(pre_i)
            gf = jax.nn.sigmoid(pre_f)
            go = jax.nn.sigmoid(pre_o)
            gg = jnp.tanh(ag)                               # activation = tanh

        new_c = (gf * c_prev + gi * gg).astype(jnp.float32)
        tc = jnp.tanh(new_c.astype(jnp.bfloat16)) if bf16_gates else jnp.tanh(new_c)
        new_h = go * tc

        c_out_ref[0, :, sl] = new_c
        h_out_ref[0, :, sl] = new_h.astype(jnp.bfloat16)


def _bf16_gate_math_ok():
    """bf16 VPU/EUP exists on v6e/v7x only; use f32 gate math elsewhere."""
    try:
        kind = jax.devices()[0].device_kind.lower()
    except Exception:
        return False
    return any(tag in kind for tag in ("v6", "v7", "tpu7", "7x"))


def conv_lstm_cell(x, h, c, w, b, pw, *, kernel_size, dilation):
    """x, h, c in NCHW (PyTorch convention). Returns (new_h[bf16], new_c[f32])."""
    N, Ci, H, W = x.shape
    Ch = h.shape[1]
    K = kernel_size
    Cin = Ci + Ch
    pad = (K - 1) // 2                      # literal PyTorch padding
    # The original module is only shape-consistent (conv output broadcastable
    # with c) when the convolution is size-preserving.
    # TODO(synk): for dilation > 1 the PyTorch module's own forward fails
    # (padding=(K-1)//2 shrinks A, breaking the elementwise peephole add), so
    # only the size-preserving configuration is supported here.
    assert 2 * pad == dilation * (K - 1), "non size-preserving conv config"
    # TODO(synk): a spatially-tiled (haloed-DMA) variant would be needed for
    # very large H*W; typical ConvLSTM resolutions fit a single block.

    HW = H * W
    Hp = H + 2 * pad
    L = Hp * W + 2 * pad                    # flat length incl. flat end pads
    Cp = ((Cin + 15) // 16) * 16            # channel pad -> bf16 sublane aligned
    KK = K * K
    KKp = ((KK * Cp + 1 + 127) // 128) * 128   # contraction pad (+1 bias row)
    G = 4 * Ch

    # ---- wrapper-side operand prep (plain JAX, no K^2-expanded slab) -------
    xh = jnp.concatenate([x, h], axis=1)                       # (N, Cin, H, W)
    xh = jnp.pad(xh, ((0, 0), (0, Cp - Cin), (pad, pad), (0, 0)))
    xh_flat = jnp.pad(xh.reshape(N, Cp, Hp * W), ((0, 0), (0, 0), (pad, pad)))
    xh_flat = xh_flat.astype(jnp.bfloat16)                     # (N, Cp, L)

    # Per-column-tap masks: in the flat layout a column shift wraps across row
    # boundaries; positions that should read W-padding are zeroed.
    col = jnp.arange(HW, dtype=jnp.int32) % W
    masks = jnp.stack(
        [((col + kw * dilation - pad >= 0) & (col + kw * dilation - pad < W))
         for kw in range(K)], axis=0).astype(jnp.bfloat16)     # (K, HW)

    # Flattened conv weight: tap-major / channel-minor columns + bias column.
    w_k = jnp.transpose(w, (3, 0, 1, 2)).reshape(G, KK, Cin)   # HWIO -> (G,KK,Cin)
    w_k = jnp.pad(w_k, ((0, 0), (0, 0), (0, Cp - Cin))).reshape(G, KK * Cp)
    w_full = jnp.zeros((G, KKp), jnp.float32)
    w_full = w_full.at[:, :KK * Cp].set(w_k)
    w_full = w_full.at[:, KK * Cp].set(b)                      # folded bias
    w_full = w_full.astype(jnp.bfloat16)

    pw_t = jnp.transpose(pw).astype(jnp.float32)               # (Ch, 3) [i,f,o]
    c_flat = c.reshape(N, Ch, HW).astype(jnp.float32)

    chunk = 128 if HW % 128 == 0 else HW
    bf16_gates = _bf16_gate_math_ok()

    # VMEM budget sanity check (double-buffered blocks + scratch); keeps well
    # under the v7x 32 MiB default scoped limit so 2-deep pipelining survives.
    vmem_bytes = (2 * Cp * L * 2 + 2 * Ch * HW * 4 + K * HW * 2
                  + G * KKp * 2 + Ch * 3 * 4
                  + 2 * Ch * HW * 2 + 2 * Ch * HW * 4
                  + KKp * HW * 2 + G * HW * 4)
    assert vmem_bytes < 24 * 1024 * 1024, "spatial extent too large for one block"

    kernel = functools.partial(
        convlstm_cell_kernel, hidden=Ch, k=K, dil=dilation, width=W,
        cp=Cp, chunk=chunk, bf16_gates=bf16_gates)

    grid_spec = pltpu.PrefetchScalarGridSpec(
        num_scalar_prefetch=0,
        grid=(N,),
        in_specs=[
            pl.BlockSpec((1, Cp, L), lambda n: (n, 0, 0)),     # [x;h] flat
            pl.BlockSpec((1, Ch, HW), lambda n: (n, 0, 0)),    # c_prev
            pl.BlockSpec((K, HW), lambda n: (0, 0)),           # column masks
            pl.BlockSpec((G, KKp), lambda n: (0, 0)),          # resident weight
            pl.BlockSpec((Ch, 3), lambda n: (0, 0)),           # peephole
        ],
        out_specs=[
            pl.BlockSpec((1, Ch, HW), lambda n: (n, 0, 0)),    # new_h (bf16)
            pl.BlockSpec((1, Ch, HW), lambda n: (n, 0, 0)),    # new_c (f32)
        ],
        scratch_shapes=[
            pltpu.VMEM((KKp, HW), jnp.bfloat16),               # im2col slab
            pltpu.VMEM((G, HW), jnp.float32),                  # matmul acc
        ],
    )

    new_h, new_c = pl.pallas_call(
        kernel,
        out_shape=(jax.ShapeDtypeStruct((N, Ch, HW), jnp.bfloat16),
                   jax.ShapeDtypeStruct((N, Ch, HW), jnp.float32)),
        grid_spec=grid_spec,
        compiler_params=pltpu.CompilerParams(
            dimension_semantics=("parallel",),
            vmem_limit_bytes=32 * 1024 * 1024),
    )(xh_flat, c_flat, masks, w_full, pw_t)

    return new_h.reshape(N, Ch, H, W), new_c.reshape(N, Ch, H, W)


def reference(x, h, c, w, b, pw, kernel_size, dilation):
    """Plain-JAX reference mirroring the PyTorch forward (literal padding)."""
    pad = (kernel_size - 1) // 2
    xh = jnp.concatenate([x, h], axis=1)
    A = jax.lax.conv_general_dilated(
        xh, w, window_strides=(1, 1),
        padding=[(pad, pad), (pad, pad)],
        rhs_dilation=(dilation, dilation),
        dimension_numbers=("NCHW", "HWIO", "NCHW"))
    A = A + b[None, :, None, None]
    ai, af, ao, ag = jnp.split(A, 4, axis=1)
    f = jax.nn.sigmoid(af + c * pw[1][None, :, None, None])
    i = jax.nn.sigmoid(ai + c * pw[0][None, :, None, None])
    g = jnp.tanh(ag)
    o = jax.nn.sigmoid(ao + c * pw[2][None, :, None, None])
    new_c = f * c + i * g
    new_h = o * jnp.tanh(new_c)
    return new_h, new_c


if __name__ == "__main__":
    # Small shapes consistent with the module's forward.
    N, Ci, Ch, H, W = 2, 4, 32, 16, 16
    K = 3
    dilation = 1   # only size-preserving config; see TODO in conv_lstm_cell

    key = jax.random.PRNGKey(0)
    k1, k2, k3, k4, k5, k6 = jax.random.split(key, 6)

    x = jax.random.normal(k1, (N, Ci, H, W), jnp.float32)
    h = jax.random.normal(k2, (N, Ch, H, W), jnp.float32)
    c = jax.random.normal(k3, (N, Ch, H, W), jnp.float32)

    # Deterministic synthetic parameters (shapes per ConvLSTMCell.__init__).
    fan_in = (Ci + Ch) * K * K
    bound = 1.0 / (fan_in ** 0.5)
    w = jax.random.uniform(k4, (K, K, Ci + Ch, 4 * Ch), jnp.float32,
                           minval=-bound, maxval=bound)        # HWIO conv weight
    b = jax.random.uniform(k5, (4 * Ch,), jnp.float32,
                           minval=-bound, maxval=bound)
    # PyTorch inits peephole_weights to zeros; use small random values so the
    # peephole path is exercised (still deterministic).
    pw = 0.1 * jax.random.normal(k6, (3, Ch), jnp.float32)

    new_h, new_c = conv_lstm_cell(x, h, c, w, b, pw,
                                  kernel_size=K, dilation=dilation)
    jax.block_until_ready((new_h, new_c))

    ref_h, ref_c = reference(x, h, c, w, b, pw, K, dilation)
    assert new_h.shape == (N, Ch, H, W) and new_c.shape == (N, Ch, H, W)
    # bf16 matmul operands, bf16 h output (and bf16 gate math on v6e/v7x)
    # with f32 accumulation -> loosened tolerance.
    assert jnp.allclose(new_h.astype(jnp.float32), ref_h, atol=5e-2, rtol=5e-2), \
        "h mismatch"
    assert jnp.allclose(new_c, ref_c, atol=5e-2, rtol=5e-2), "c mismatch"

    print("KERNEL_OK")
</pallas_src>

<mosaic_0001>
module attributes {stable_mosaic.version = 11 : i64} {
  func.func @convlstm_cell_kernel(%arg0: i32, %arg1: memref<1x48x290xbf16, #tpu.memory_space<vmem>>, %arg2: memref<1x32x256xf32, #tpu.memory_space<vmem>>, %arg3: memref<3x256xbf16, #tpu.memory_space<vmem>>, %arg4: memref<128x512xbf16, #tpu.memory_space<vmem>>, %arg5: memref<32x3xf32, #tpu.memory_space<vmem>>, %arg6: memref<1x32x256xbf16, #tpu.memory_space<vmem>>, %arg7: memref<1x32x256xf32, #tpu.memory_space<vmem>>, %arg8: memref<512x256xbf16, #tpu.memory_space<vmem>>, %arg9: memref<128x256xf32, #tpu.memory_space<vmem>>) attributes {dimension_semantics = [#tpu.dimension_semantics<parallel>], iteration_bounds = array<i64: 2>, scalar_prefetch = 0 : i64, scratch_operands = 2 : i64, tpu.core_type = #tpu.core_type<tc>, window_params = [{transform_indices = @transform_0, window_bounds = array<i64: 1, 48, 290>}, {transform_indices = @transform_1, window_bounds = array<i64: 1, 32, 256>}, {pipeline_mode = #tpu.pipeline_mode<synchronous>, transform_indices = @transform_2, window_bounds = array<i64: 3, 256>}, {pipeline_mode = #tpu.pipeline_mode<synchronous>, transform_indices = @transform_3, window_bounds = array<i64: 128, 512>}, {pipeline_mode = #tpu.pipeline_mode<synchronous>, transform_indices = @transform_4, window_bounds = array<i64: 32, 3>}, {transform_indices = @transform_5, window_bounds = array<i64: 1, 32, 256>}, {transform_indices = @transform_6, window_bounds = array<i64: 1, 32, 256>}]} {
    %c0 = arith.constant 0 : index
    %c0_0 = arith.constant 0 : index
    %c0_1 = arith.constant 0 : index
    %0 = vector.load %arg1[%c0, %c0_0, %c0_1] : memref<1x48x290xbf16, #tpu.memory_space<vmem>>, vector<1x48x256xbf16>
    %1 = vector.shape_cast %0 : vector<1x48x256xbf16> to vector<48x256xbf16>
    %c0_2 = arith.constant 0 : index
    %c0_3 = arith.constant 0 : index
    %2 = vector.load %arg3[%c0_2, %c0_3] : memref<3x256xbf16, #tpu.memory_space<vmem>>, vector<1x256xbf16>
    %3 = vector.broadcast %2 : vector<1x256xbf16> to vector<48x256xbf16>
    %4 = arith.mulf %1, %3 : vector<48x256xbf16>
    %c0_4 = arith.constant 0 : index
    %c0_5 = arith.constant 0 : index
    %5 = vector.load %arg8[%c0_4, %c0_5] : memref<512x256xbf16, #tpu.memory_space<vmem>>, vector<48x256xbf16>
    tpu.vector_store %arg8[%c0_4, %c0_5], %4 {strides = array<i32>} : memref<512x256xbf16, #tpu.memory_space<vmem>>, vector<48x256xbf16>,
    %c0_6 = arith.constant 0 : index
    %c0_7 = arith.constant 0 : index
    %c1 = arith.constant 1 : index
    %6 = vector.load %arg1[%c0_6, %c0_7, %c1] : memref<1x48x290xbf16, #tpu.memory_space<vmem>>, vector<1x48x256xbf16>
    %7 = vector.shape_cast %6 : vector<1x48x256xbf16> to vector<48x256xbf16>
    %c1_8 = arith.constant 1 : index
    %c0_9 = arith.constant 0 : index
    %8 = vector.load %arg3[%c1_8, %c0_9] : memref<3x256xbf16, #tpu.memory_space<vmem>>, vector<1x256xbf16>
    %9 = vector.broadcast %8 : vector<1x256xbf16> to vector<48x256xbf16>
    %10 = arith.mulf %7, %9 : vector<48x256xbf16>
    %c48 = arith.constant 48 : index
    %c0_10 = arith.constant 0 : index
    %11 = vector.load %arg8[%c48, %c0_10] : memref<512x256xbf16, #tpu.memory_space<vmem>>, vector<48x256xbf16>
    tpu.vector_store %arg8[%c48, %c0_10], %10 {strides = array<i32>} : memref<512x256xbf16, #tpu.memory_space<vmem>>, vector<48x256xbf16>,
    %c0_11 = arith.constant 0 : index
    %c0_12 = arith.constant 0 : index
    %c2 = arith.constant 2 : index
    %12 = vector.load %arg1[%c0_11, %c0_12, %c2] : memref<1x48x290xbf16, #tpu.memory_space<vmem>>, vector<1x48x256xbf16>
    %13 = vector.shape_cast %12 : vector<1x48x256xbf16> to vector<48x256xbf16>
    %c2_13 = arith.constant 2 : index
    %c0_14 = arith.constant 0 : index
    %14 = vector.load %arg3[%c2_13, %c0_14] : memref<3x256xbf16, #tpu.memory_space<vmem>>, vector<1x256xbf16>
    %15 = vector.broadcast %14 : vector<1x256xbf16> to vector<48x256xbf16>
    %16 = arith.mulf %13, %15 : vector<48x256xbf16>
    %c96 = arith.constant 96 : index
    %c0_15 = arith.constant 0 : index
    %17 = vector.load %arg8[%c96, %c0_15] : memref<512x256xbf16, #tpu.memory_space<vmem>>, vector<48x256xbf16>
    tpu.vector_store %arg8[%c96, %c0_15], %16 {strides = array<i32>} : memref<512x256xbf16, #tpu.memory_space<vmem>>, vector<48x256xbf16>,
    %c0_16 = arith.constant 0 : index
    %c0_17 = arith.constant 0 : index
    %c16 = arith.constant 16 : index
    %18 = vector.load %arg1[%c0_16, %c0_17, %c16] : memref<1x48x290xbf16, #tpu.memory_space<vmem>>, vector<1x48x256xbf16>
    %19 = vector.shape_cast %18 : vector<1x48x256xbf16> to vector<48x256xbf16>
    %c0_18 = arith.constant 0 : index
    %c0_19 = arith.constant 0 : index
    %20 = vector.load %arg3[%c0_18, %c0_19] : memref<3x256xbf16, #tpu.memory_space<vmem>>, vector<1x256xbf16>
    %21 = vector.broadcast %20 : vector<1x256xbf16> to vector<48x256xbf16>
    %22 = arith.mulf %19, %21 : vector<48x256xbf16>
    %c144 = arith.constant 144 : index
    %c0_20 = arith.constant 0 : index
    %23 = vector.load %arg8[%c144, %c0_20] : memref<512x256xbf16, #tpu.memory_space<vmem>>, vector<48x256xbf16>
    tpu.vector_store %arg8[%c144, %c0_20], %22 {strides = array<i32>} : memref<512x256xbf16, #tpu.memory_space<vmem>>, vector<48x256xbf16>,
    %c0_21 = arith.constant 0 : index
    %c0_22 = arith.constant 0 : index
    %c17 = arith.constant 17 : index
    %24 = vector.load %arg1[%c0_21, %c0_22, %c17] : memref<1x48x290xbf16, #tpu.memory_space<vmem>>, vector<1x48x256xbf16>
    %25 = vector.shape_cast %24 : vector<1x48x256xbf16> to vector<48x256xbf16>
    %c1_23 = arith.constant 1 : index
    %c0_24 = arith.constant 0 : index
    %26 = vector.load %arg3[%c1_23, %c0_24] : memref<3x256xbf16, #tpu.memory_space<vmem>>, vector<1x256xbf16>
    %27 = vector.broadcast %26 : vector<1x256xbf16> to vector<48x256xbf16>
    %28 = arith.mulf %25, %27 : vector<48x256xbf16>
    %c192 = arith.constant 192 : index
    %c0_25 = arith.constant 0 : index
    %29 = vector.load %arg8[%c192, %c0_25] : memref<512x256xbf16, #tpu.memory_space<vmem>>, vector<48x256xbf16>
    tpu.vector_store %arg8[%c192, %c0_25], %28 {strides = array<i32>} : memref<512x256xbf16, #tpu.memory_space<vmem>>, vector<48x256xbf16>,
    %c0_26 = arith.constant 0 : index
    %c0_27 = arith.constant 0 : index
    %c18 = arith.constant 18 : index
    %30 = vector.load %arg1[%c0_26, %c0_27, %c18] : memref<1x48x290xbf16, #tpu.memory_space<vmem>>, vector<1x48x256xbf16>
    %31 = vector.shape_cast %30 : vector<1x48x256xbf16> to vector<48x256xbf16>
    %c2_28 = arith.constant 2 : index
    %c0_29 = arith.constant 0 : index
    %32 = vector.load %arg3[%c2_28, %c0_29] : memref<3x256xbf16, #tpu.memory_space<vmem>>, vector<1x256xbf16>
    %33 = vector.broadcast %32 : vector<1x256xbf16> to vector<48x256xbf16>
    %34 = arith.mulf %31, %33 : vector<48x256xbf16>
    %c240 = arith.constant 240 : index
    %c0_30 = arith.constant 0 : index
    %35 = vector.load %arg8[%c240, %c0_30] : memref<512x256xbf16, #tpu.memory_space<vmem>>, vector<48x256xbf16>
    tpu.vector_store %arg8[%c240, %c0_30], %34 {strides = array<i32>} : memref<512x256xbf16, #tpu.memory_space<vmem>>, vector<48x256xbf16>,
    %c0_31 = arith.constant 0 : index
    %c0_32 = arith.constant 0 : index
    %c32 = arith.constant 32 : index
    %36 = vector.load %arg1[%c0_31, %c0_32, %c32] : memref<1x48x290xbf16, #tpu.memory_space<vmem>>, vector<1x48x256xbf16>
    %37 = vector.shape_cast %36 : vector<1x48x256xbf16> to vector<48x256xbf16>
    %c0_33 = arith.constant 0 : index
    %c0_34 = arith.constant 0 : index
    %38 = vector.load %arg3[%c0_33, %c0_34] : memref<3x256xbf16, #tpu.memory_space<vmem>>, vector<1x256xbf16>
    %39 = vector.broadcast %38 : vector<1x256xbf16> to vector<48x256xbf16>
    %40 = arith.mulf %37, %39 : vector<48x256xbf16>
    %c288 = arith.constant 288 : index
    %c0_35 = arith.constant 0 : index
    %41 = vector.load %arg8[%c288, %c0_35] : memref<512x256xbf16, #tpu.memory_space<vmem>>, vector<48x256xbf16>
    tpu.vector_store %arg8[%c288, %c0_35], %40 {strides = array<i32>} : memref<512x256xbf16, #tpu.memory_space<vmem>>, vector<48x256xbf16>,
    %c0_36 = arith.constant 0 : index
    %c0_37 = arith.constant 0 : index
    %c33 = arith.constant 33 : index
    %42 = vector.load %arg1[%c0_36, %c0_37, %c33] : memref<1x48x290xbf16, #tpu.memory_space<vmem>>, vector<1x48x256xbf16>
    %43 = vector.shape_cast %42 : vector<1x48x256xbf16> to vector<48x256xbf16>
    %c1_38 = arith.constant 1 : index
    %c0_39 = arith.constant 0 : index
    %44 = vector.load %arg3[%c1_38, %c0_39] : memref<3x256xbf16, #tpu.memory_space<vmem>>, vector<1x256xbf16>
    %45 = vector.broadcast %44 : vector<1x256xbf16> to vector<48x256xbf16>
    %46 = arith.mulf %43, %45 : vector<48x256xbf16>
    %c336 = arith.constant 336 : index
    %c0_40 = arith.constant 0 : index
    %47 = vector.load %arg8[%c336, %c0_40] : memref<512x256xbf16, #tpu.memory_space<vmem>>, vector<48x256xbf16>
    tpu.vector_store %arg8[%c336, %c0_40], %46 {strides = array<i32>} : memref<512x256xbf16, #tpu.memory_space<vmem>>, vector<48x256xbf16>,
    %c0_41 = arith.constant 0 : index
    %c0_42 = arith.constant 0 : index
    %c34 = arith.constant 34 : index
    %48 = vector.load %arg1[%c0_41, %c0_42, %c34] : memref<1x48x290xbf16, #tpu.memory_space<vmem>>, vector<1x48x256xbf16>
    %49 = vector.shape_cast %48 : vector<1x48x256xbf16> to vector<48x256xbf16>
    %c2_43 = arith.constant 2 : index
    %c0_44 = arith.constant 0 : index
    %50 = vector.load %arg3[%c2_43, %c0_44] : memref<3x256xbf16, #tpu.memory_space<vmem>>, vector<1x256xbf16>
    %51 = vector.broadcast %50 : vector<1x256xbf16> to vector<48x256xbf16>
    %52 = arith.mulf %49, %51 : vector<48x256xbf16>
    %c384 = arith.constant 384 : index
    %c0_45 = arith.constant 0 : index
    %53 = vector.load %arg8[%c384, %c0_45] : memref<512x256xbf16, #tpu.memory_space<vmem>>, vector<48x256xbf16>
    tpu.vector_store %arg8[%c384, %c0_45], %52 {strides = array<i32>} : memref<512x256xbf16, #tpu.memory_space<vmem>>, vector<48x256xbf16>,
    %54 = tpu.iota {dimensions = array<i32: 0>} : vector<80x256xi32>
    %c0_i32 = arith.constant 0 : i32
    %55 = vector.broadcast %c0_i32 : i32 to vector<80x256xi32>
    %56 = arith.cmpi eq, %54, %55 : vector<80x256xi32>
    %cst = arith.constant 1.000000e+00 : f32
    %cst_46 = arith.constant 0.000000e+00 : f32
    %57 = vector.broadcast %cst : f32 to vector<80x256xf32>
    %58 = vector.broadcast %cst_46 : f32 to vector<80x256xf32>
    %59 = arith.select %56, %57, %58 : vector<80x256xi1>, vector<80x256xf32>
    %60 = arith.truncf %59 : vector<80x256xf32> to vector<80x256xbf16>
    %c432 = arith.constant 432 : index
    %c0_47 = arith.constant 0 : index
    %61 = vector.load %arg8[%c432, %c0_47] : memref<512x256xbf16, #tpu.memory_space<vmem>>, vector<80x256xbf16>
    tpu.vector_store %arg8[%c432, %c0_47], %60 {strides = array<i32>} : memref<512x256xbf16, #tpu.memory_space<vmem>>, vector<80x256xbf16>,
    %c0_48 = arith.constant 0 : index
    %c0_49 = arith.constant 0 : index
    %62 = vector.load %arg4[%c0_48, %c0_49] : memref<128x512xbf16, #tpu.memory_space<vmem>>, vector<128x512xbf16>
    %c0_50 = arith.constant 0 : index
    %c0_51 = arith.constant 0 : index
    %63 = vector.load %arg8[%c0_50, %c0_51] : memref<512x256xbf16, #tpu.memory_space<vmem>>, vector<512x256xbf16>
    %cst_52 = arith.constant dense<0.000000e+00> : vector<128x256xf32>
    %64 = tpu.matmul %62, %63, %cst_52 {dimension_numbers = #tpu.dot_dimension_numbers<[1], [0], [0], [1], [0, 0, 1, 1], [], []>} : vector<128x512xbf16>, vector<512x256xbf16>, vector<128x256xf32> -> vector<128x256xf32>
    %c0_53 = arith.constant 0 : index
    %c0_54 = arith.constant 0 : index
    %65 = vector.load %arg9[%c0_53, %c0_54] : memref<128x256xf32, #tpu.memory_space<vmem>>, vector<128x256xf32>
    tpu.vector_store %arg9[%c0_53, %c0_54], %64 {strides = array<i32>} : memref<128x256xf32, #tpu.memory_space<vmem>>, vector<128x256xf32>,
    %c0_55 = arith.constant 0 : index
    %c0_56 = arith.constant 0 : index
    %66 = vector.load %arg5[%c0_55, %c0_56] : memref<32x3xf32, #tpu.memory_space<vmem>>, vector<32x1xf32>
    %c0_57 = arith.constant 0 : index
    %c1_58 = arith.constant 1 : index
    %67 = vector.load %arg5[%c0_57, %c1_58] : memref<32x3xf32, #tpu.memory_space<vmem>>, vector<32x1xf32>
    %c0_59 = arith.constant 0 : index
    %c2_60 = arith.constant 2 : index
    %68 = vector.load %arg5[%c0_59, %c2_60] : memref<32x3xf32, #tpu.memory_space<vmem>>, vector<32x1xf32>
    %c0_61 = arith.constant 0 : index
    %c0_62 = arith.constant 0 : index
    %69 = vector.load %arg9[%c0_61, %c0_62] : memref<128x256xf32, #tpu.memory_space<vmem>>, vector<32x128xf32>
    %c32_63 = arith.constant 32 : index
    %c0_64 = arith.constant 0 : index
    %70 = vector.load %arg9[%c32_63, %c0_64] : memref<128x256xf32, #tpu.memory_space<vmem>>, vector<32x128xf32>
    %c64 = arith.constant 64 : index
    %c0_65 = arith.constant 0 : index
    %71 = vector.load %arg9[%c64, %c0_65] : memref<128x256xf32, #tpu.memory_space<vmem>>, vector<32x128xf32>
    %c96_66 = arith.constant 96 : index
    %c0_67 = arith.constant 0 : index
    %72 = vector.load %arg9[%c96_66, %c0_67] : memref<128x256xf32, #tpu.memory_space<vmem>>, vector<32x128xf32>
    %c0_68 = arith.constant 0 : index
    %c0_69 = arith.constant 0 : index
    %c0_70 = arith.constant 0 : index
    %73 = vector.load %arg2[%c0_68, %c0_69, %c0_70] : memref<1x32x256xf32, #tpu.memory_space<vmem>>, vector<1x32x128xf32>
    %74 = vector.shape_cast %73 : vector<1x32x128xf32> to vector<32x128xf32>
    %75 = vector.broadcast %66 : vector<32x1xf32> to vector<32x128xf32>
    %76 = arith.mulf %74, %75 : vector<32x128xf32>
    %77 = arith.addf %69, %76 : vector<32x128xf32>
    %78 = vector.broadcast %67 : vector<32x1xf32> to vector<32x128xf32>
    %79 = arith.mulf %74, %78 : vector<32x128xf32>
    %80 = arith.addf %70, %79 : vector<32x128xf32>
    %81 = vector.broadcast %68 : vector<32x1xf32> to vector<32x128xf32>
    %82 = arith.mulf %74, %81 : vector<32x128xf32>
    %83 = arith.addf %71, %82 : vector<32x128xf32>
    %84 = arith.negf %77 : vector<32x128xf32>
    %85 = math.exp %84 : vector<32x128xf32>
    %cst_71 = arith.constant 1.000000e+00 : f32
    %86 = vector.broadcast %cst_71 : f32 to vector<32x128xf32>
    %87 = arith.addf %86, %85 : vector<32x128xf32>
    %88 = arith.divf %86, %87 : vector<32x128xf32>
    %89 = arith.negf %80 : vector<32x128xf32>
    %90 = math.exp %89 : vector<32x128xf32>
    %cst_72 = arith.constant 1.000000e+00 : f32
    %91 = vector.broadcast %cst_72 : f32 to vector<32x128xf32>
    %92 = arith.addf %91, %90 : vector<32x128xf32>
    %93 = arith.divf %91, %92 : vector<32x128xf32>
    %94 = arith.negf %83 : vector<32x128xf32>
    %95 = math.exp %94 : vector<32x128xf32>
    %cst_73 = arith.constant 1.000000e+00 : f32
    %96 = vector.broadcast %cst_73 : f32 to vector<32x128xf32>
    %97 = arith.addf %96, %95 : vector<32x128xf32>
    %98 = arith.divf %96, %97 : vector<32x128xf32>
    %99 = math.tanh %72 : vector<32x128xf32>
    %100 = arith.mulf %93, %74 : vector<32x128xf32>
    %101 = arith.mulf %88, %99 : vector<32x128xf32>
    %102 = arith.addf %100, %101 : vector<32x128xf32>
    %103 = math.tanh %102 : vector<32x128xf32>
    %104 = arith.mulf %98, %103 : vector<32x128xf32>
    %c0_74 = arith.constant 0 : index
    %c0_75 = arith.constant 0 : index
    %c0_76 = arith.constant 0 : index
    %105 = vector.load %arg7[%c0_74, %c0_75, %c0_76] : memref<1x32x256xf32, #tpu.memory_space<vmem>>, vector<1x32x128xf32>
    %106 = vector.shape_cast %105 : vector<1x32x128xf32> to vector<32x128xf32>
    %107 = vector.shape_cast %102 : vector<32x128xf32> to vector<1x32x128xf32>
    tpu.vector_store %arg7[%c0_74, %c0_75, %c0_76], %107 {strides = array<i32>} : memref<1x32x256xf32, #tpu.memory_space<vmem>>, vector<1x32x128xf32>,
    %108 = arith.truncf %104 : vector<32x128xf32> to vector<32x128xbf16>
    %c0_77 = arith.constant 0 : index
    %c0_78 = arith.constant 0 : index
    %c0_79 = arith.constant 0 : index
    %109 = vector.load %arg6[%c0_77, %c0_78, %c0_79] : memref<1x32x256xbf16, #tpu.memory_space<vmem>>, vector<1x32x128xbf16>
    %110 = vector.shape_cast %109 : vector<1x32x128xbf16> to vector<32x128xbf16>
    %111 = vector.shape_cast %108 : vector<32x128xbf16> to vector<1x32x128xbf16>
    tpu.vector_store %arg6[%c0_77, %c0_78, %c0_79], %111 {strides = array<i32>} : memref<1x32x256xbf16, #tpu.memory_space<vmem>>, vector<1x32x128xbf16>,
    %c0_80 = arith.constant 0 : index
    %c128 = arith.constant 128 : index
    %112 = vector.load %arg9[%c0_80, %c128] : memref<128x256xf32, #tpu.memory_space<vmem>>, vector<32x128xf32>
    %c32_81 = arith.constant 32 : index
    %c128_82 = arith.constant 128 : index
    %113 = vector.load %arg9[%c32_81, %c128_82] : memref<128x256xf32, #tpu.memory_space<vmem>>, vector<32x128xf32>
    %c64_83 = arith.constant 64 : index
    %c128_84 = arith.constant 128 : index
    %114 = vector.load %arg9[%c64_83, %c128_84] : memref<128x256xf32, #tpu.memory_space<vmem>>, vector<32x128xf32>
    %c96_85 = arith.constant 96 : index
    %c128_86 = arith.constant 128 : index
    %115 = vector.load %arg9[%c96_85, %c128_86] : memref<128x256xf32, #tpu.memory_space<vmem>>, vector<32x128xf32>
    %c0_87 = arith.constant 0 : index
    %c0_88 = arith.constant 0 : index
    %c128_89 = arith.constant 128 : index
    %116 = vector.load %arg2[%c0_87, %c0_88, %c128_89] : memref<1x32x256xf32, #tpu.memory_space<vmem>>, vector<1x32x128xf32>
    %117 = vector.shape_cast %116 : vector<1x32x128xf32> to vector<32x128xf32>
    %118 = vector.broadcast %66 : vector<32x1xf32> to vector<32x128xf32>
    %119 = arith.mulf %117, %118 : vector<32x128xf32>
    %120 = arith.addf %112, %119 : vector<32x128xf32>
    %121 = vector.broadcast %67 : vector<32x1xf32> to vector<32x128xf32>
    %122 = arith.mulf %117, %121 : vector<32x128xf32>
    %123 = arith.addf %113, %122 : vector<32x128xf32>
    %124 = vector.broadcast %68 : vector<32x1xf32> to vector<32x128xf32>
    %125 = arith.mulf %117, %124 : vector<32x128xf32>
    %126 = arith.addf %114, %125 : vector<32x128xf32>
    %127 = arith.negf %120 : vector<32x128xf32>
    %128 = math.exp %127 : vector<32x128xf32>
    %cst_90 = arith.constant 1.000000e+00 : f32
    %129 = vector.broadcast %cst_90 : f32 to vector<32x128xf32>
    %130 = arith.addf %129, %128 : vector<32x128xf32>
    %131 = arith.divf %129, %130 : vector<32x128xf32>
    %132 = arith.negf %123 : vector<32x128xf32>
    %133 = math.exp %132 : vector<32x128xf32>
    %cst_91 = arith.constant 1.000000e+00 : f32
    %134 = vector.broadcast %cst_91 : f32 to vector<32x128xf32>
    %135 = arith.addf %134, %133 : vector<32x128xf32>
    %136 = arith.divf %134, %135 : vector<32x128xf32>
    %137 = arith.negf %126 : vector<32x128xf32>
    %138 = math.exp %137 : vector<32x128xf32>
    %cst_92 = arith.constant 1.000000e+00 : f32
    %139 = vector.broadcast %cst_92 : f32 to vector<32x128xf32>
    %140 = arith.addf %139, %138 : vector<32x128xf32>
    %141 = arith.divf %139, %140 : vector<32x128xf32>
    %142 = math.tanh %115 : vector<32x128xf32>
    %143 = arith.mulf %136, %117 : vector<32x128xf32>
    %144 = arith.mulf %131, %142 : vector<32x128xf32>
    %145 = arith.addf %143, %144 : vector<32x128xf32>
    %146 = math.tanh %145 : vector<32x128xf32>
    %147 = arith.mulf %141, %146 : vector<32x128xf32>
    %c0_93 = arith.constant 0 : index
    %c0_94 = arith.constant 0 : index
    %c128_95 = arith.constant 128 : index
    %148 = vector.load %arg7[%c0_93, %c0_94, %c128_95] : memref<1x32x256xf32, #tpu.memory_space<vmem>>, vector<1x32x128xf32>
    %149 = vector.shape_cast %148 : vector<1x32x128xf32> to vector<32x128xf32>
    %150 = vector.shape_cast %145 : vector<32x128xf32> to vector<1x32x128xf32>
    tpu.vector_store %arg7[%c0_93, %c0_94, %c128_95], %150 {strides = array<i32>} : memref<1x32x256xf32, #tpu.memory_space<vmem>>, vector<1x32x128xf32>,
    %151 = arith.truncf %147 : vector<32x128xf32> to vector<32x128xbf16>
    %c0_96 = arith.constant 0 : index
    %c0_97 = arith.constant 0 : index
    %c128_98 = arith.constant 128 : index
    %152 = vector.load %arg6[%c0_96, %c0_97, %c128_98] : memref<1x32x256xbf16, #tpu.memory_space<vmem>>, vector<1x32x128xbf16>
    %153 = vector.shape_cast %152 : vector<1x32x128xbf16> to vector<32x128xbf16>
    %154 = vector.shape_cast %151 : vector<32x128xbf16> to vector<1x32x128xbf16>
    tpu.vector_store %arg6[%c0_96, %c0_97, %c128_98], %154 {strides = array<i32>} : memref<1x32x256xbf16, #tpu.memory_space<vmem>>, vector<1x32x128xbf16>,
    return
  }
  func.func @transform_0(%arg0: i32) -> (i32, i32, i32) {
    %c0_i32 = arith.constant 0 : i32
    %c0_i32_0 = arith.constant 0 : i32
    %c0_i32_1 = arith.constant 0 : i32
    return %arg0, %c0_i32, %c0_i32_0 : i32, i32, i32
  }
  func.func @transform_1(%arg0: i32) -> (i32, i32, i32) {
    %c0_i32 = arith.constant 0 : i32
    %c0_i32_0 = arith.constant 0 : i32
    %c0_i32_1 = arith.constant 0 : i32
    return %arg0, %c0_i32, %c0_i32_0 : i32, i32, i32
  }
  func.func @transform_2(%arg0: i32) -> (i32, i32) {
    %c0_i32 = arith.constant 0 : i32
    %c0_i32_0 = arith.constant 0 : i32
    %c0_i32_1 = arith.constant 0 : i32
    return %c0_i32, %c0_i32_0 : i32, i32
  }
  func.func @transform_3(%arg0: i32) -> (i32, i32) {
    %c0_i32 = arith.constant 0 : i32
    %c0_i32_0 = arith.constant 0 : i32
    %c0_i32_1 = arith.constant 0 : i32
    return %c0_i32, %c0_i32_0 : i32, i32
  }
  func.func @transform_4(%arg0: i32) -> (i32, i32) {
    %c0_i32 = arith.constant 0 : i32
    %c0_i32_0 = arith.constant 0 : i32
    %c0_i32_1 = arith.constant 0 : i32
    return %c0_i32, %c0_i32_0 : i32, i32
  }
  func.func @transform_5(%arg0: i32) -> (i32, i32, i32) {
    %c0_i32 = arith.constant 0 : i32
    %c0_i32_0 = arith.constant 0 : i32
    %c0_i32_1 = arith.constant 0 : i32
    return %arg0, %c0_i32, %c0_i32_0 : i32, i32, i32
  }
  func.func @transform_6(%arg0: i32) -> (i32, i32, i32) {
    %c0_i32 = arith.constant 0 : i32
    %c0_i32_0 = arith.constant 0 : i32
    %c0_i32_1 = arith.constant 0 : i32
    return %arg0, %c0_i32, %c0_i32_0 : i32, i32, i32
  }
}

</mosaic_0001>

<llo_original>
// kernel: tpu_custom_call.1
$region0: #{tpu_custom_call.1}
  #allocation0 [shape = 'u32[]', space=smem, size = 0x4, offset = 0x4, fixed_abs, tag = 'smem constant byte address 0x4 - core index']
  #allocation1 [shape = 'u32[144,128]{1,0:T(1,128)}', space=vmem, size = 0x12000, scoped, tag = 'internal scratch']
  #allocation2 [shape = 'bf16[512,256]{1,0:T(16,128)(2,1)}', space=vmem, size = 0x40000, scoped, tag = 'scratch operand']
  #allocation3 [shape = 'f32[128,256]{1,0:T(8,128)}', space=vmem, size = 0x20000, scoped, tag = 'scratch operand']
  %s0 = inlined_call_operand.hbm [shape: bf16[2,48,290], index: 0, kind: input, shape index: {}]
  %s1 = inlined_call_operand.hbm [shape: f32[2,32,256], index: 1, kind: input, shape index: {}]
  %s2 = inlined_call_operand.vmem [shape: bf16[3,256], index: 2, kind: input, shape index: {}]
  %s3 = inlined_call_operand.hbm [shape: bf16[128,512], index: 3, kind: input, shape index: {}]
  %s4 = inlined_call_operand.vmem [shape: f32[32,3], index: 4, kind: input, shape index: {}]
  %s5 = inlined_call_operand.hbm [shape: bf16[2,32,256], index: 5, kind: output, shape index: {0}]
  %s6 = inlined_call_operand.hbm [shape: f32[2,32,256], index: 6, kind: output, shape index: {1}]
  %7 = xla_tuple %s5, %s6
  %s8 = sld [smem:[#allocation0]]
  $region73: #{tpu_custom_call.1} parent=0
    _
  %s10 = ssub.s32 1, %s8
  %s11 = scalar_select 0, %s10, %s8
  $region1: #{tpu_custom_call.1} parent=0
    #allocation4 [shape = 'u8[73728]{0}', space=vmem, size = 0x12000, scoped, tag = 'input window, operand 0']
    #allocation5 [shape = 's32[2]{0}', space=sflag, size = 0x8, scoped, tag = 'scoped memory for tpu_custom_call.1']
    #allocation6 [shape = 's32[2]{0}', space=sflag, size = 0x8, scoped, tag = 'scoped memory for tpu_custom_call.1']
    #allocation7 [shape = 'u8[65536]{0}', space=vmem, size = 0x10000, scoped, tag = 'input window, operand 1']
    #allocation8 [shape = 's32[2]{0}', space=sflag, size = 0x8, scoped, tag = 'scoped memory for tpu_custom_call.1']
    #allocation9 [shape = 'u8[131072]{0}', space=vmem, size = 0x20000, scoped, tag = 'input window, operand 3, single buffered']
    #allocation10 [shape = 'u8[32768]{0}', space=vmem, size = 0x8000, scoped, tag = 'output window, operand 0']
    #allocation11 [shape = 'u8[65536]{0}', space=vmem, size = 0x10000, scoped, tag = 'output window, operand 1']
    #allocation12 [shape = 's32[2]{0}', space=sflag, size = 0x8, scoped, tag = 'scoped memory for tpu_custom_call.1']
    %12 = vsyncpa [#allocation5], 0
    %s13 = scalar_lea.sflag [#allocation5], 1
    %14 = vsyncpa %s13, 0
    %15 = vsyncpa [#allocation8], 0
    %s16 = scalar_lea.sflag [#allocation8], 1
    %17 = vsyncpa %s16, 0
    %18 = vsyncpa [#allocation6], 0
    %s19 = scalar_lea.sflag [#allocation6], 1
    %20 = vsyncpa %s19, 0
    %21 = vsyncpa [#allocation12], 0
    %s22 = scalar_lea.sflag [#allocation12], 1
    %23 = vsyncpa %s22, 0
    loop: start=0, step=1, limit=4
    $region2: #{tpu_custom_call.1} parent=1 // loop_pre_header
      _
    $region3: #{tpu_custom_call.1} parent=1 // loop_header
      %s25 = sphi 0, %s29
      %p26 = scmp.ge.s32.totalorder %s25, 4
      %s35 = sphi 0, %s37
      %s38 = sphi 0, %s35
      %s39 = sphi 0, %s38
      %s55 = sphi 0, %s39
      %s61 = sphi 0, %s63
      %s64 = sphi 0, %s61
      %s65 = sphi 0, %s64
      %s81 = sphi 0, %s65
      %s85 = sphi 0, %s85
      %s87 = sphi 0, %s85
      %s88 = sphi 0, %s87
      %s102 = sphi 0, %s88
      %s106 = sphi 0, %s106
      %s108 = sphi 0, %s106
      %s109 = sphi 0, %s108
      %s123 = sphi 0, %s109
      %s127 = sphi 0, %s127
      %s129 = sphi 0, %s127
      %s130 = sphi 0, %s129
      %s144 = sphi 0, %s130
      %s150 = sphi 0, %s152
      %s153 = sphi 0, %s150
      %s154 = sphi 0, %s153
      %s170 = sphi 0, %s154
      %s176 = sphi 0, %s178
      %s179 = sphi 0, %s176
      %s180 = sphi 0, %s179
      %s196 = sphi 0, %s180
    $region4: #{tpu_custom_call.1} parent=1 // loop_header_branch
      %28 = sbr.rel (%p26) target = $region8
    $region5: #{tpu_custom_call.1} parent=1 // loop_body
      %s30 = ssub.s32 %s25, 1
      %s31 = ssub.s32 %s25, 2
      %s32 = sadd.s32 %s25, 1
      %s33 = ssub.s32 %s25, %s32
      %p34 = scmp.eq.s32.totalorder %s33, 0
      %s36 = sadd.s32 %s35, 1
      %s37 = scalar_select %p34, %s35, %s36
      %p40 = pneg %p34
      %p41 = scmp.eq.s32.totalorder %s25, 1
      %p42 = por %p40, %p41
      %p43 = scmp.ne.s32.totalorder %s35, %s38
      %p44 = scmp.eq.s32.totalorder %s25, 0
      %p45 = por %p43, %p44
      %p46 = scmp.ne.s32.totalorder %s35, %s38
      %p47 = scmp.eq.s32.totalorder %s30, 1
      %p48 = por %p46, %p47
      %p49 = scmp.ne.s32.totalorder %s38, %s39
      %p50 = scmp.eq.s32.totalorder %s30, 0
      %p51 = por %p49, %p50
      %p52 = scmp.ne.s32.totalorder %s38, %s39
      %p53 = scmp.eq.s32.totalorder %s31, 1
      %p54 = por %p52, %p53
      %p56 = scmp.ne.s32.totalorder %s39, %s55
      %p57 = scmp.eq.s32.totalorder %s31, 0
      %p58 = por %p56, %p57
      %s59 = ssub.s32 %s25, %s32
      %p60 = scmp.eq.s32.totalorder %s59, 0
      %s62 = sadd.s32 %s61, 1
      %s63 = scalar_select %p60, %s61, %s62
      %p66 = pneg %p60
      %p67 = scmp.eq.s32.totalorder %s25, 1
      %p68 = por %p66, %p67
      %p69 = scmp.ne.s32.totalorder %s61, %s64
      %p70 = scmp.eq.s32.totalorder %s25, 0
      %p71 = por %p69, %p70
      %p72 = scmp.ne.s32.totalorder %s61, %s64
      %p73 = scmp.eq.s32.totalorder %s30, 1
      %p74 = por %p72, %p73
      %p75 = scmp.ne.s32.totalorder %s64, %s65
      %p76 = scmp.eq.s32.totalorder %s30, 0
      %p77 = por %p75, %p76
      %p78 = scmp.ne.s32.totalorder %s64, %s65
      %p79 = scmp.eq.s32.totalorder %s31, 1
      %p80 = por %p78, %p79
      %p82 = scmp.ne.s32.totalorder %s65, %s81
      %p83 = scmp.eq.s32.totalorder %s31, 0
      %p84 = por %p82, %p83
      %s86 = sadd.s32 %s85, 1
      %p89 = scmp.eq.s32.totalorder %s25, 1
      %p90 = scmp.ne.s32.totalorder %s85, %s87
      %p91 = scmp.eq.s32.totalorder %s25, 0
      %p92 = por %p90, %p91
      %p93 = scmp.ne.s32.totalorder %s85, %s87
      %p94 = scmp.eq.s32.totalorder %s30, 1
      %p95 = por %p93, %p94
      %p96 = scmp.ne.s32.totalorder %s87, %s88
      %p97 = scmp.eq.s32.totalorder %s30, 0
      %p98 = por %p96, %p97
      %p99 = scmp.ne.s32.totalorder %s87, %s88
      %p100 = scmp.eq.s32.totalorder %s31, 1
      %p101 = por %p99, %p100
      %p103 = scmp.ne.s32.totalorder %s88, %s102
      %p104 = scmp.eq.s32.totalorder %s31, 0
      %p105 = por %p103, %p104
      %s107 = sadd.s32 %s106, 1
      %p110 = scmp.eq.s32.totalorder %s25, 1
      %p111 = scmp.ne.s32.totalorder %s106, %s108
      %p112 = scmp.eq.s32.totalorder %s25, 0
      %p113 = por %p111, %p112
      %p114 = scmp.ne.s32.totalorder %s106, %s108
      %p115 = scmp.eq.s32.totalorder %s30, 1
      %p116 = por %p114, %p115
      %p117 = scmp.ne.s32.totalorder %s108, %s109
      %p118 = scmp.eq.s32.totalorder %s30, 0
      %p119 = por %p117, %p118
      %p120 = scmp.ne.s32.totalorder %s108, %s109
      %p121 = scmp.eq.s32.totalorder %s31, 1
      %p122 = por %p120, %p121
      %p124 = scmp.ne.s32.totalorder %s109, %s123
      %p125 = scmp.eq.s32.totalorder %s31, 0
      %p126 = por %p124, %p125
      %s128 = sadd.s32 %s127, 1
      %p131 = scmp.eq.s32.totalorder %s25, 1
      %p132 = scmp.ne.s32.totalorder %s127, %s129
      %p133 = scmp.eq.s32.totalorder %s25, 0
      %p134 = por %p132, %p133
      %p135 = scmp.ne.s32.totalorder %s127, %s129
      %p136 = scmp.eq.s32.totalorder %s30, 1
      %p137 = por %p135, %p136
      %p138 = scmp.ne.s32.totalorder %s129, %s130
      %p139 = scmp.eq.s32.totalorder %s30, 0
      %p140 = por %p138, %p139
      %p141 = scmp.ne.s32.totalorder %s129, %s130
      %p142 = scmp.eq.s32.totalorder %s31, 1
      %p143 = por %p141, %p142
      %p145 = scmp.ne.s32.totalorder %s130, %s144
      %p146 = scmp.eq.s32.totalorder %s31, 0
      %p147 = por %p145, %p146
      %s148 = ssub.s32 %s25, %s32
      %p149 = scmp.eq.s32.totalorder %s148, 0
      %s151 = sadd.s32 %s150, 1
      %s152 = scalar_select %p149, %s150, %s151
      %p155 = pneg %p149
      %p156 = scmp.eq.s32.totalorder %s25, 1
      %p157 = por %p155, %p156
      %p158 = scmp.ne.s32.totalorder %s150, %s153
      %p159 = scmp.eq.s32.totalorder %s25, 0
      %p160 = por %p158, %p159
      %p161 = scmp.ne.s32.totalorder %s150, %s153
      %p162 = scmp.eq.s32.totalorder %s30, 1
      %p163 = por %p161, %p162
      %p164 = scmp.ne.s32.totalorder %s153, %s154
      %p165 = scmp.eq.s32.totalorder %s30, 0
      %p166 = por %p164, %p165
      %p167 = scmp.ne.s32.totalorder %s153, %s154
      %p168 = scmp.eq.s32.totalorder %s31, 1
      %p169 = por %p167, %p168
      %p171 = scmp.ne.s32.totalorder %s154, %s170
      %p172 = scmp.eq.s32.totalorder %s31, 0
      %p173 = por %p171, %p172
      %s174 = ssub.s32 %s25, %s32
      %p175 = scmp.eq.s32.totalorder %s174, 0
      %s177 = sadd.s32 %s176, 1
      %s178 = scalar_select %p175, %s176, %s177
      %p181 = pneg %p175
      %p182 = scmp.eq.s32.totalorder %s25, 1
      %p183 = por %p181, %p182
      %p184 = scmp.ne.s32.totalorder %s176, %s179
      %p185 = scmp.eq.s32.totalorder %s25, 0
      %p186 = por %p184, %p185
      %p187 = scmp.ne.s32.totalorder %s176, %s179
      %p188 = scmp.eq.s32.totalorder %s30, 1
      %p189 = por %p187, %p188
      %p190 = scmp.ne.s32.totalorder %s179, %s180
      %p191 = scmp.eq.s32.totalorder %s30, 0
      %p192 = por %p190, %p191
      %p193 = scmp.ne.s32.totalorder %s179, %s180
      %p194 = scmp.eq.s32.totalorder %s31, 1
      %p195 = por %p193, %p194
      %p197 = scmp.ne.s32.totalorder %s180, %s196
      %p198 = scmp.eq.s32.totalorder %s31, 0
      %p199 = por %p197, %p198
      %p200 = scmp.le.s32.totalorder 1, %s25
      %p201 = scmp.lt.s32.totalorder %s25, 3
      %p202 = pnand %p200, %p201
      %p203 = pneg %p202
      // Predicated region
      $region9: #{tpu_custom_call.1} parent=5 // pred_check
        _
      $region10: #{tpu_custom_call.1} parent=5 // pred_check_branch
        %205 = sbr.rel (%p202) target = $region12
      $region11: #{tpu_custom_call.1} parent=5 // pred_region
        %s206 = ssub.s32 %s25, 1
        // Predicated region
        $region13: #{tpu_custom_call.1} parent=11 // pred_check
          %p207 = pneg %p98
        $region14: #{tpu_custom_call.1} parent=11 // pred_check_branch
          %209 = sbr.rel (%p207) target = $region16
        $region15: #{tpu_custom_call.1} parent=11 // pred_region
          _
        $region16: #{tpu_custom_call.1} parent=11 // pred_fallthru
          _
        // Predicated region
        $region17: #{tpu_custom_call.1} parent=11 // pred_check
          %p210 = pneg %p119
        $region18: #{tpu_custom_call.1} parent=11 // pred_check_branch
          %212 = sbr.rel (%p210) target = $region20
        $region19: #{tpu_custom_call.1} parent=11 // pred_region
          %s214 = ssub.s32 4096, 4096
          %215 = vsyncadd [#allocation8], %s214
          %s216 = sshll.u32 [#allocation9], 4
          %s217 = int_to_ptr.vmem [resolvable:$true] %s216
          %222 = dma.hbm_to_vmem [thread:$0]  %s3, 4096, %s217, [#allocation8], 256, 256, 16
        $region20: #{tpu_custom_call.1} parent=11 // pred_fallthru
          _
        // Predicated region
        $region21: #{tpu_custom_call.1} parent=11 // pred_check
          %p223 = pneg %p140
        $region22: #{tpu_custom_call.1} parent=11 // pred_check_branch
          %225 = sbr.rel (%p223) target = $region24
        $region23: #{tpu_custom_call.1} parent=11 // pred_region
          _
        $region24: #{tpu_custom_call.1} parent=11 // pred_fallthru
          _
      $region12: #{tpu_custom_call.1} parent=5 // pred_fallthru
        _
      %p226 = scmp.lt.s32.totalorder %s25, 2
      // Predicated region
      $region25: #{tpu_custom_call.1} parent=5 // pred_check
        %p227 = pneg %p226
      $region26: #{tpu_custom_call.1} parent=5 // pred_check_branch
        %229 = sbr.rel (%p227) target = $region28
      $region27: #{tpu_custom_call.1} parent=5 // pred_region
        // Predicated region
        $region29: #{tpu_custom_call.1} parent=27 // pred_check
          %p230 = pneg %p45
        $region30: #{tpu_custom_call.1} parent=27 // pred_check_branch
          %232 = sbr.rel (%p230) target = $region32
        $region31: #{tpu_custom_call.1} parent=27 // pred_region
          %s233 = sand.u32 %s35, 1
          %s234 = scalar_lea.sflag [#allocation5], %s233
          %s235 = sand.u32 %s35, 1
          %s236 = smul.addr %s235, 72
          %s237 = scalar_lea.vmem [#allocation4], %s236
          %s239 = ssub.s32 1152, 1152
          %240 = vsyncadd %s234, %s239
          %s241 = smul.addr %s25, 18
          %s242 = smul.addr %s241, 64
          %s243 = scalar_lea.hbm %s0, %s242
          %s244 = sshll.u32 %s237, 4
          %s245 = int_to_ptr.vmem [resolvable:$true] %s244
          %250 = dma.hbm_to_vmem [thread:$0]  %s243, 1152, %s245, %s234, 192, 192, 12
        $region32: #{tpu_custom_call.1} parent=27 // pred_fallthru
          _
        // Predicated region
        $region33: #{tpu_custom_call.1} parent=27 // pred_check
          %p251 = pneg %p71
        $region34: #{tpu_custom_call.1} parent=27 // pred_check_branch
          %253 = sbr.rel (%p251) target = $region36
        $region35: #{tpu_custom_call.1} parent=27 // pred_region
          %s254 = sand.u32 %s25, 1
          %s255 = scalar_lea.sflag [#allocation8], %s254
          %s256 = sand.u32 %s61, 1
          %s257 = smul.addr %s256, 64
          %s258 = scalar_lea.vmem [#allocation7], %s257
          %s260 = ssub.s32 1024, 1024
          %261 = vsyncadd %s255, %s260
          %s262 = smul.addr %s25, 8
          %s263 = smul.addr %s262, 128
          %s264 = scalar_lea.hbm %s1, %s263
          %s265 = sshll.u32 %s258, 4
          %s266 = int_to_ptr.vmem [resolvable:$true] %s265
          %271 = dma.hbm_to_vmem [thread:$0]  %s264, 1024, %s266, %s255, 256, 256, 16
        $region36: #{tpu_custom_call.1} parent=27 // pred_fallthru
          _
      $region28: #{tpu_custom_call.1} parent=5 // pred_fallthru
        _
      %p272 = scmp.le.s32.totalorder 1, %s25
      %p273 = scmp.lt.s32.totalorder %s25, 3
      %p274 = pnand %p272, %p273
      %p275 = pneg %p274
      // Predicated region
      $region37: #{tpu_custom_call.1} parent=5 // pred_check
        _
      $region38: #{tpu_custom_call.1} parent=5 // pred_check_branch
        %277 = sbr.rel (%p274) target = $region40
      $region39: #{tpu_custom_call.1} parent=5 // pred_region
        %s278 = ssub.s32 %s25, 1
        %s279 = sand.u32 %s38, 1
        %s280 = scalar_lea.sflag [#allocation5], %s279
        %s281 = sand.u32 %s38, 1
        %s282 = smul.addr %s281, 72
        %s283 = scalar_lea.vmem [#allocation4], %s282
        // Predicated region
        $region41: #{tpu_custom_call.1} parent=39 // pred_check
          %p284 = pneg %p51
        $region42: #{tpu_custom_call.1} parent=39 // pred_check_branch
          %286 = sbr.rel (%p284) target = $region44
        $region43: #{tpu_custom_call.1} parent=39 // pred_region
          %287 = dma.done %s280, 1152
        $region44: #{tpu_custom_call.1} parent=39 // pred_fallthru
          _
        %s288 = sand.u32 %s30, 1
        %s289 = scalar_lea.sflag [#allocation8], %s288
        %s290 = sand.u32 %s64, 1
        %s291 = smul.addr %s290, 64
        %s292 = scalar_lea.vmem [#allocation7], %s291
        // Predicated region
        $region45: #{tpu_custom_call.1} parent=39 // pred_check
          %p293 = pneg %p77
        $region46: #{tpu_custom_call.1} parent=39 // pred_check_branch
          %295 = sbr.rel (%p293) target = $region48
        $region47: #{tpu_custom_call.1} parent=39 // pred_region
          %296 = dma.done %s289, 1024
        $region48: #{tpu_custom_call.1} parent=39 // pred_fallthru
          _
        // Predicated region
        $region49: #{tpu_custom_call.1} parent=39 // pred_check
          %p297 = pneg %p119
        $region50: #{tpu_custom_call.1} parent=39 // pred_check_branch
          %299 = sbr.rel (%p297) target = $region52
        $region51: #{tpu_custom_call.1} parent=39 // pred_region
          %300 = dma.done [#allocation8], 4096
        $region52: #{tpu_custom_call.1} parent=39 // pred_fallthru
          _
        %s301 = sand.u32 %s38, 1
        %s302 = scalar_lea.sflag [#allocation5], %s301
        %s303 = sand.u32 %s38, 1
        %s304 = smul.addr %s303, 72
        %s305 = scalar_lea.vmem [#allocation4], %s304
        %p306 = pneg %p51
        %p307 = pneg %p48
        %s308 = sand.u32 %s30, 1
        %s309 = scalar_lea.sflag [#allocation8], %s308
        %s310 = sand.u32 %s64, 1
        %s311 = smul.addr %s310, 64
        %s312 = scalar_lea.vmem [#allocation7], %s311
        %p313 = pneg %p77
        %p314 = pneg %p74
        %p315 = pneg %p98
        %p316 = pneg %p95
        %p317 = pneg %p119
        %p318 = pneg %p116
        %p319 = pneg %p140
        %p320 = pneg %p137
        %p321 = pneg %p166
        %p322 = pneg %p163
        %s323 = sand.u32 %s153, 1
        %s324 = scalar_lea.sflag [#allocation6], %s323
        %s325 = sand.u32 %s153, 1
        %s326 = smul.addr %s325, 32
        %s327 = scalar_lea.vmem [#allocation10], %s326
        %p328 = pneg %p192
        %p329 = pneg %p189
        %s330 = sand.u32 %s179, 1
        %s331 = scalar_lea.sflag [#allocation12], %s330
        %s332 = sand.u32 %s179, 1
        %s333 = smul.addr %s332, 64
        %s334 = scalar_lea.vmem [#allocation11], %s333
        %v335 = vld [vmem:[%s283] sm:$0xff]
        %v336 = vld [vmem:[%s283 + $0xc] sm:$0xff]
        %v337 = vld [vmem:[%s283 + $0x18] sm:$0xff]
        %v338 = vld [vmem:[%s283 + $0x24] sm:$0xff]
        %v339 = vld [vmem:[%s283 + $0x30] sm:$0xff]
        %v340 = vld [vmem:[%s283 + $0x3c] sm:$0xff]
        %v341 = vld [vmem:[%s2] sm:$0x5]
        %v344 = vunpack.c.l.s4 1983009808
        %v345 = vunpack.c.0.s8 %v344
        %v346 = vlaneseq
        %v347 = vshrl.u32 %v346, 7
        %v348 = vsub.s32 %v345, %v347
        %v349 = vrot.slane %v341, %v348
        %v350 = vcombine.high %v349, %v349
        %v352 = vpack.i.b16 %v349, %v349
        %v354 = vlaneseq
        %v355 = vshrl.u32 %v354, 7
        %v356 = vsub.s32 0, %v355
        %v357 = vrot.slane %v352, %v356
        %v359 = vpack.i.b16 %v350, %v350
        %v361 = vlaneseq
        %v362 = vshrl.u32 %v361, 7
        %v363 = vsub.s32 0, %v362
        %v364 = vrot.slane %v359, %v363
        %v367 = vunpack.c.l.b16 %v357
        %v368 = vunpack.c.l.b16 %v364
        %v369 = vpack.c.b16 %v368, %v367
        %v371 = vmul.bf16 %v335, %v369
        %v372 = vmul.bf16 %v336, %v369
        %v373 = vmul.bf16 %v337, %v369
        %v374 = vmul.bf16 %v338, %v369
        %v375 = vmul.bf16 %v339, %v369
        %v376 = vmul.bf16 %v340, %v369
        %v383 = vunpack.c.l.b16 %v371
        %v384 = vunpack.c.h.b16 %v371
        %v385 = vunpack.c.l.b16 %v372
        %v386 = vunpack.c.h.b16 %v372
        %v387 = vunpack.c.l.b16 %v373
        %v388 = vunpack.c.h.b16 %v373
        %v389 = vunpack.c.l.b16 %v374
        %v390 = vunpack.c.h.b16 %v374
        %v391 = vunpack.c.l.b16 %v375
        %v392 = vunpack.c.h.b16 %v375
        %v393 = vunpack.c.l.b16 %v376
        %v394 = vunpack.c.h.b16 %v376
        %v395 = vpack.c.b16 %v385, %v383
        %v396 = vpack.c.b16 %v386, %v384
        %v397 = vpack.c.b16 %v389, %v387
        %v398 = vpack.c.b16 %v390, %v388
        %v399 = vpack.c.b16 %v393, %v391
        %v400 = vpack.c.b16 %v394, %v392
        %407 = vst [vmem:[#allocation2] sm:$0xff] %v395
        %408 = vst [vmem:[#allocation2 + $0x8] sm:$0xff] %v396
        %409 = vst [vmem:[#allocation2 + $0x10] sm:$0xff] %v397
        %410 = vst [vmem:[#allocation2 + $0x18] sm:$0xff] %v398
        %411 = vst [vmem:[#allocation2 + $0x20] sm:$0xff] %v399
        %412 = vst [vmem:[#allocation2 + $0x28] sm:$0xff] %v400
        %v413 = vld [vmem:[%s283] sm:$0xff]
        %v414 = vld [vmem:[%s283 + $0x8] sm:$0xf]
        %v415 = vld [vmem:[%s283 + $0xc] sm:$0xff]
        %v416 = vld [vmem:[%s283 + $0x14] sm:$0xf]
        %v417 = vld [vmem:[%s283 + $0x18] sm:$0xff]
        %v418 = vld [vmem:[%s283 + $0x20] sm:$0xf]
        %v419 = vld [vmem:[%s283 + $0x24] sm:$0xff]
        %v420 = vld [vmem:[%s283 + $0x2c] sm:$0xf]
        %v421 = vld [vmem:[%s283 + $0x30] sm:$0xff]
        %v422 = vld [vmem:[%s283 + $0x38] sm:$0xf]
        %v423 = vld [vmem:[%s283 + $0x3c] sm:$0xff]
        %v424 = vld [vmem:[%s283 + $0x44] sm:$0xf]
        %v425 = vld [vmem:[%s2] sm:$0x5]
        %v428 = vunpack.c.l.s4 1983009808
        %v429 = vunpack.c.0.s8 %v428
        %v430 = vlaneseq
        %v431 = vshrl.u32 %v430, 7
        %v432 = vsub.s32 %v429, %v431
        %v433 = vrot.slane %v425, %v432
        %v434 = vcombine.high %v433, %v433
        %v436 = vshrl.u32 %v433, 16
        %v437 = vpack.i.b16 %v436, %v436
        %v439 = vlaneseq
        %v440 = vshrl.u32 %v439, 7
        %v441 = vsub.s32 0, %v440
        %v442 = vrot.slane %v437, %v441
        %v444 = vshrl.u32 %v434, 16
        %v445 = vpack.i.b16 %v444, %v444
        %v447 = vlaneseq
        %v448 = vshrl.u32 %v447, 7
        %v449 = vsub.s32 0, %v448
        %v450 = vrot.slane %v445, %v449
        %v453 = vunpack.c.l.b16 %v442
        %v454 = vunpack.c.l.b16 %v450
        %v455 = vpack.c.b16 %v454, %v453
        %456 = vrot.lane.b32.xlu0 %v455, 1
        %v457 = vpop.permute.xlu0 %456
        %v458 = vrot.slane %v457, 4
        %vm459 = vcmask 7168
        %v460 = vsel %vm459, %v458, %v457
        %v463 = vmul.bf16 %v413, %v460
        %v464 = vmul.bf16 %v414, %v458
        %v465 = vmul.bf16 %v415, %v460
        %v466 = vmul.bf16 %v416, %v458
        %v467 = vmul.bf16 %v417, %v460
        %v468 = vmul.bf16 %v418, %v458
        %v469 = vmul.bf16 %v419, %v460
        %v470 = vmul.bf16 %v420, %v458
        %v471 = vmul.bf16 %v421, %v460
        %v472 = vmul.bf16 %v422, %v458
        %v473 = vmul.bf16 %v423, %v460
        %v474 = vmul.bf16 %v424, %v458
        %v487 = vunpack.c.l.b16 %v463
        %v488 = vunpack.c.h.b16 %v463
        %v489 = vunpack.c.l.b16 %v464
        %v490 = vunpack.c.l.b16 %v465
        %v491 = vunpack.c.h.b16 %v465
        %v492 = vunpack.c.l.b16 %v466
        %v493 = vunpack.c.l.b16 %v467
        %v494 = vunpack.c.h.b16 %v467
        %v495 = vunpack.c.l.b16 %v468
        %v496 = vunpack.c.l.b16 %v469
        %v497 = vunpack.c.h.b16 %v469
        %v498 = vunpack.c.l.b16 %v470
        %v499 = vunpack.c.l.b16 %v471
        %v500 = vunpack.c.h.b16 %v471
        %v501 = vunpack.c.l.b16 %v472
        %v502 = vunpack.c.l.b16 %v473
        %v503 = vunpack.c.h.b16 %v473
        %v504 = vunpack.c.l.b16 %v474
        %v505 = vpack.c.b16 %v490, %v487
        %v506 = vpack.c.b16 %v491, %v488
        %v507 = vpack.c.b16 %v492, %v489
        %v508 = vpack.c.b16 %v496, %v493
        %v509 = vpack.c.b16 %v497, %v494
        %v510 = vpack.c.b16 %v498, %v495
        %v511 = vpack.c.b16 %v502, %v499
        %v512 = vpack.c.b16 %v503, %v500
        %v513 = vpack.c.b16 %v504, %v501
        %514 = vrot.lane.b32.xlu0 %v505, 127
        %v515 = vpop.permute.xlu0 %514
        %516 = vrot.lane.b32.xlu0 %v506, 127
        %v517 = vpop.permute.xlu0 %516
        %518 = vrot.lane.b32.xlu0 %v507, 127
        %v519 = vpop.permute.xlu0 %518
        %520 = vrot.lane.b32.xlu0 %v508, 127
        %v521 = vpop.permute.xlu0 %520
        %522 = vrot.lane.b32.xlu0 %v509, 127
        %v523 = vpop.permute.xlu0 %522
        %524 = vrot.lane.b32.xlu0 %v510, 127
        %v525 = vpop.permute.xlu0 %524
        %526 = vrot.lane.b32.xlu0 %v511, 127
        %v527 = vpop.permute.xlu0 %526
        %528 = vrot.lane.b32.xlu0 %v512, 127
        %v529 = vpop.permute.xlu0 %528
        %530 = vrot.lane.b32.xlu0 %v513, 127
        %v531 = vpop.permute.xlu0 %530
        %vm532 = vcmask 1039360
        %v533 = vsel %vm532, %v515, %v517
        %v534 = vsel %vm532, %v517, %v519
        %v535 = vsel %vm532, %v521, %v523
        %v536 = vsel %vm532, %v523, %v525
        %v537 = vsel %vm532, %v527, %v529
        %v538 = vsel %vm532, %v529, %v531
        %545 = vst [vmem:[#allocation2 + $0x30] sm:$0xff] %v533
        %546 = vst [vmem:[#allocation2 + $0x38] sm:$0xff] %v534
        %547 = vst [vmem:[#allocation2 + $0x40] sm:$0xff] %v535
        %548 = vst [vmem:[#allocation2 + $0x48] sm:$0xff] %v536
        %549 = vst [vmem:[#allocation2 + $0x50] sm:$0xff] %v537
        %550 = vst [vmem:[#allocation2 + $0x58] sm:$0xff] %v538
        %v551 = vld [vmem:[%s283] sm:$0xff]
        %v552 = vld [vmem:[%s283 + $0x8] sm:$0xf]
        %v553 = vld [vmem:[%s283 + $0xc] sm:$0xff]
        %v554 = vld [vmem:[%s283 + $0x14] sm:$0xf]
        %v555 = vld [vmem:[%s283 + $0x18] sm:$0xff]
        %v556 = vld [vmem:[%s283 + $0x20] sm:$0xf]
        %v557 = vld [vmem:[%s283 + $0x24] sm:$0xff]
        %v558 = vld [vmem:[%s283 + $0x2c] sm:$0xf]
        %v559 = vld [vmem:[%s283 + $0x30] sm:$0xff]
        %v560 = vld [vmem:[%s283 + $0x38] sm:$0xf]
        %v561 = vld [vmem:[%s283 + $0x3c] sm:$0xff]
        %v562 = vld [vmem:[%s283 + $0x44] sm:$0xf]
        %v563 = vld [vmem:[%s2] sm:$0xa]
        %v566 = vunpack.c.l.s4 1983009808
        %v567 = vunpack.c.0.s8 %v566
        %v568 = vlaneseq
        %v569 = vshrl.u32 %v568, 7
        %v570 = vsub.s32 %v567, %v569
        %v571 = vrot.slane %v563, %v570
        %v572 = vcombine.high %v571, %v571
        %v574 = vpack.i.b16 %v571, %v571
        %v576 = vlaneseq
        %v577 = vshrl.u32 %v576, 7
        %v578 = vsub.s32 1, %v577
        %v579 = vrot.slane %v574, %v578
        %v581 = vpack.i.b16 %v572, %v572
        %v583 = vlaneseq
        %v584 = vshrl.u32 %v583, 7
        %v585 = vsub.s32 1, %v584
        %v586 = vrot.slane %v581, %v585
        %v589 = vunpack.c.l.b16 %v579
        %v590 = vunpack.c.l.b16 %v586
        %v591 = vpack.c.b16 %v590, %v589
        %592 = vrot.lane.b32.xlu0 %v591, 2
        %v593 = vpop.permute.xlu0 %592
        %v594 = vrot.slane %v593, 4
        %vm595 = vcmask 15360
        %v596 = vsel %vm595, %v594, %v593
        %v599 = vmul.bf16 %v551, %v596
        %v600 = vmul.bf16 %v552, %v594
        %v601 = vmul.bf16 %v553, %v596
        %v602 = vmul.bf16 %v554, %v594
        %v603 = vmul.bf16 %v555, %v596
        %v604 = vmul.bf16 %v556, %v594
        %v605 = vmul.bf16 %v557, %v596
        %v606 = vmul.bf16 %v558, %v594
        %v607 = vmul.bf16 %v559, %v596
        %v608 = vmul.bf16 %v560, %v594
        %v609 = vmul.bf16 %v561, %v596
        %v610 = vmul.bf16 %v562, %v594
        %v623 = vunpack.c.l.b16 %v599
        %v624 = vunpack.c.h.b16 %v599
        %v625 = vunpack.c.l.b16 %v600
        %v626 = vunpack.c.l.b16 %v601
        %v627 = vunpack.c.h.b16 %v601
        %v628 = vunpack.c.l.b16 %v602
        %v629 = vunpack.c.l.b16 %v603
        %v630 = vunpack.c.h.b16 %v603
        %v631 = vunpack.c.l.b16 %v604
        %v632 = vunpack.c.l.b16 %v605
        %v633 = vunpack.c.h.b16 %v605
        %v634 = vunpack.c.l.b16 %v606
        %v635 = vunpack.c.l.b16 %v607
        %v636 = vunpack.c.h.b16 %v607
        %v637 = vunpack.c.l.b16 %v608
        %v638 = vunpack.c.l.b16 %v609
        %v639 = vunpack.c.h.b16 %v609
        %v640 = vunpack.c.l.b16 %v610
        %v641 = vpack.c.b16 %v626, %v623
        %v642 = vpack.c.b16 %v627, %v624
        %v643 = vpack.c.b16 %v628, %v625
        %v644 = vpack.c.b16 %v632, %v629
        %v645 = vpack.c.b16 %v633, %v630
        %v646 = vpack.c.b16 %v634, %v631
        %v647 = vpack.c.b16 %v638, %v635
        %v648 = vpack.c.b16 %v639, %v636
        %v649 = vpack.c.b16 %v640, %v637
        %650 = vrot.lane.b32.xlu0 %v641, 126
        %v651 = vpop.permute.xlu0 %650
        %652 = vrot.lane.b32.xlu0 %v642, 126
        %v653 = vpop.permute.xlu0 %652
        %654 = vrot.lane.b32.xlu0 %v643, 126
        %v655 = vpop.permute.xlu0 %654
        %656 = vrot.lane.b32.xlu0 %v644, 126
        %v657 = vpop.permute.xlu0 %656
        %658 = vrot.lane.b32.xlu0 %v645, 126
        %v659 = vpop.permute.xlu0 %658
        %660 = vrot.lane.b32.xlu0 %v646, 126
        %v661 = vpop.permute.xlu0 %660
        %662 = vrot.lane.b32.xlu0 %v647, 126
        %v663 = vpop.permute.xlu0 %662
        %664 = vrot.lane.b32.xlu0 %v648, 126
        %v665 = vpop.permute.xlu0 %664
        %666 = vrot.lane.b32.xlu0 %v649, 126
        %v667 = vpop.permute.xlu0 %666
        %vm668 = vcmask 1031168
        %v669 = vsel %vm668, %v651, %v653
        %v670 = vsel %vm668, %v653, %v655
        %v671 = vsel %vm668, %v657, %v659
        %v672 = vsel %vm668, %v659, %v661
        %v673 = vsel %vm668, %v663, %v665
        %v674 = vsel %vm668, %v665, %v667
        %681 = vst [vmem:[#allocation2 + $0x60] sm:$0xff] %v669
        %682 = vst [vmem:[#allocation2 + $0x68] sm:$0xff] %v670
        %683 = vst [vmem:[#allocation2 + $0x70] sm:$0xff] %v671
        %684 = vst [vmem:[#allocation2 + $0x78] sm:$0xff] %v672
        %685 = vst [vmem:[#allocation2 + $0x80] sm:$0xff] %v673
        %686 = vst [vmem:[#allocation2 + $0x88] sm:$0xff] %v674
        %v687 = vld [vmem:[%s283] sm:$0xff]
        %v688 = vld [vmem:[%s283 + $0x8] sm:$0xf]
        %v689 = vld [vmem:[%s283 + $0xc] sm:$0xff]
        %v690 = vld [vmem:[%s283 + $0x14] sm:$0xf]
        %v691 = vld [vmem:[%s283 + $0x18] sm:$0xff]
        %v692 = vld [vmem:[%s283 + $0x20] sm:$0xf]
        %v693 = vld [vmem:[%s283 + $0x24] sm:$0xff]
        %v694 = vld [vmem:[%s283 + $0x2c] sm:$0xf]
        %v695 = vld [vmem:[%s283 + $0x30] sm:$0xff]
        %v696 = vld [vmem:[%s283 + $0x38] sm:$0xf]
        %v697 = vld [vmem:[%s283 + $0x3c] sm:$0xff]
        %v698 = vld [vmem:[%s283 + $0x44] sm:$0xf]
        %v699 = vld [vmem:[%s2] sm:$0x5]
        %v702 = vunpack.c.l.s4 1983009808
        %v703 = vunpack.c.0.s8 %v702
        %v704 = vlaneseq
        %v705 = vshrl.u32 %v704, 7
        %v706 = vsub.s32 %v703, %v705
        %v707 = vrot.slane %v699, %v706
        %v708 = vcombine.high %v707, %v707
        %v710 = vpack.i.b16 %v707, %v707
        %v712 = vlaneseq
        %v713 = vshrl.u32 %v712, 7
        %v714 = vsub.s32 0, %v713
        %v715 = vrot.slane %v710, %v714
        %v717 = vpack.i.b16 %v708, %v708
        %v719 = vlaneseq
        %v720 = vshrl.u32 %v719, 7
        %v721 = vsub.s32 0, %v720
        %v722 = vrot.slane %v717, %v721
        %v725 = vunpack.c.l.b16 %v715
        %v726 = vunpack.c.l.b16 %v722
        %v727 = vpack.c.b16 %v726, %v725
        %728 = vrot.lane.b32.xlu0 %v727, 16
        %v729 = vpop.permute.xlu0 %728
        %v730 = vrot.slane %v729, 4
        %vm731 = vcmask 130048
        %v732 = vsel %vm731, %v730, %v729
        %v735 = vmul.bf16 %v687, %v732
        %v736 = vmul.bf16 %v688, %v730
        %v737 = vmul.bf16 %v689, %v732
        %v738 = vmul.bf16 %v690, %v730
        %v739 = vmul.bf16 %v691, %v732
        %v740 = vmul.bf16 %v692, %v730
        %v741 = vmul.bf16 %v693, %v732
        %v742 = vmul.bf16 %v694, %v730
        %v743 = vmul.bf16 %v695, %v732
        %v744 = vmul.bf16 %v696, %v730
        %v745 = vmul.bf16 %v697, %v732
        %v746 = vmul.bf16 %v698, %v730
        %v759 = vunpack.c.l.b16 %v735
        %v760 = vunpack.c.h.b16 %v735
        %v761 = vunpack.c.l.b16 %v736
        %v762 = vunpack.c.l.b16 %v737
        %v763 = vunpack.c.h.b16 %v737
        %v764 = vunpack.c.l.b16 %v738
        %v765 = vunpack.c.l.b16 %v739
        %v766 = vunpack.c.h.b16 %v739
        %v767 = vunpack.c.l.b16 %v740
        %v768 = vunpack.c.l.b16 %v741
        %v769 = vunpack.c.h.b16 %v741
        %v770 = vunpack.c.l.b16 %v742
        %v771 = vunpack.c.l.b16 %v743
        %v772 = vunpack.c.h.b16 %v743
        %v773 = vunpack.c.l.b16 %v744
        %v774 = vunpack.c.l.b16 %v745
        %v775 = vunpack.c.h.b16 %v745
        %v776 = vunpack.c.l.b16 %v746
        %v777 = vpack.c.b16 %v762, %v759
        %v778 = vpack.c.b16 %v763, %v760
        %v779 = vpack.c.b16 %v764, %v761
        %v780 = vpack.c.b16 %v768, %v765
        %v781 = vpack.c.b16 %v769, %v766
        %v782 = vpack.c.b16 %v770, %v767
        %v783 = vpack.c.b16 %v774, %v771
        %v784 = vpack.c.b16 %v775, %v772
        %v785 = vpack.c.b16 %v776, %v773
        %786 = vrot.lane.b32.xlu0 %v777, 112
        %v787 = vpop.permute.xlu0 %786
        %788 = vrot.lane.b32.xlu0 %v778, 112
        %v789 = vpop.permute.xlu0 %788
        %790 = vrot.lane.b32.xlu0 %v779, 112
        %v791 = vpop.permute.xlu0 %790
        %792 = vrot.lane.b32.xlu0 %v780, 112
        %v793 = vpop.permute.xlu0 %792
        %794 = vrot.lane.b32.xlu0 %v781, 112
        %v795 = vpop.permute.xlu0 %794
        %796 = vrot.lane.b32.xlu0 %v782, 112
        %v797 = vpop.permute.xlu0 %796
        %798 = vrot.lane.b32.xlu0 %v783, 112
        %v799 = vpop.permute.xlu0 %798
        %800 = vrot.lane.b32.xlu0 %v784, 112
        %v801 = vpop.permute.xlu0 %800
        %802 = vrot.lane.b32.xlu0 %v785, 112
        %v803 = vpop.permute.xlu0 %802
        %vm804 = vcmask 916480
        %v805 = vsel %vm804, %v787, %v789
        %v806 = vsel %vm804, %v789, %v791
        %v807 = vsel %vm804, %v793, %v795
        %v808 = vsel %vm804, %v795, %v797
        %v809 = vsel %vm804, %v799, %v801
        %v810 = vsel %vm804, %v801, %v803
        %817 = vst [vmem:[#allocation2 + $0x90] sm:$0xff] %v805
        %818 = vst [vmem:[#allocation2 + $0x98] sm:$0xff] %v806
        %819 = vst [vmem:[#allocation2 + $0xa0] sm:$0xff] %v807
        %820 = vst [vmem:[#allocation2 + $0xa8] sm:$0xff] %v808
        %821 = vst [vmem:[#allocation2 + $0xb0] sm:$0xff] %v809
        %822 = vst [vmem:[#allocation2 + $0xb8] sm:$0xff] %v810
        %v823 = vld [vmem:[%s283] sm:$0xff]
        %v824 = vld [vmem:[%s283 + $0x8] sm:$0xf]
        %v825 = vld [vmem:[%s283 + $0xc] sm:$0xff]
        %v826 = vld [vmem:[%s283 + $0x14] sm:$0xf]
        %v827 = vld [vmem:[%s283 + $0x18] sm:$0xff]
        %v828 = vld [vmem:[%s283 + $0x20] sm:$0xf]
        %v829 = vld [vmem:[%s283 + $0x24] sm:$0xff]
        %v830 = vld [vmem:[%s283 + $0x2c] sm:$0xf]
        %v831 = vld [vmem:[%s283 + $0x30] sm:$0xff]
        %v832 = vld [vmem:[%s283 + $0x38] sm:$0xf]
        %v833 = vld [vmem:[%s283 + $0x3c] sm:$0xff]
        %v834 = vld [vmem:[%s283 + $0x44] sm:$0xf]
        %v835 = vld [vmem:[%s2] sm:$0x5]
        %v838 = vunpack.c.l.s4 1983009808
        %v839 = vunpack.c.0.s8 %v838
        %v840 = vlaneseq
        %v841 = vshrl.u32 %v840, 7
        %v842 = vsub.s32 %v839, %v841
        %v843 = vrot.slane %v835, %v842
        %v844 = vcombine.high %v843, %v843
        %v846 = vshrl.u32 %v843, 16
        %v847 = vpack.i.b16 %v846, %v846
        %v849 = vlaneseq
        %v850 = vshrl.u32 %v849, 7
        %v851 = vsub.s32 0, %v850
        %v852 = vrot.slane %v847, %v851
        %v854 = vshrl.u32 %v844, 16
        %v855 = vpack.i.b16 %v854, %v854
        %v857 = vlaneseq
        %v858 = vshrl.u32 %v857, 7
        %v859 = vsub.s32 0, %v858
        %v860 = vrot.slane %v855, %v859
        %v863 = vunpack.c.l.b16 %v852
        %v864 = vunpack.c.l.b16 %v860
        %v865 = vpack.c.b16 %v864, %v863
        %866 = vrot.lane.b32.xlu0 %v865, 17
        %v867 = vpop.permute.xlu0 %866
        %v868 = vrot.slane %v867, 4
        %vm869 = vcmask 138240
        %v870 = vsel %vm869, %v868, %v867
        %v873 = vmul.bf16 %v823, %v870
        %v874 = vmul.bf16 %v824, %v868
        %v875 = vmul.bf16 %v825, %v870
        %v876 = vmul.bf16 %v826, %v868
        %v877 = vmul.bf16 %v827, %v870
        %v878 = vmul.bf16 %v828, %v868
        %v879 = vmul.bf16 %v829, %v870
        %v880 = vmul.bf16 %v830, %v868
        %v881 = vmul.bf16 %v831, %v870
        %v882 = vmul.bf16 %v832, %v868
        %v883 = vmul.bf16 %v833, %v870
        %v884 = vmul.bf16 %v834, %v868
        %v897 = vunpack.c.l.b16 %v873
        %v898 = vunpack.c.h.b16 %v873
        %v899 = vunpack.c.l.b16 %v874
        %v900 = vunpack.c.l.b16 %v875
        %v901 = vunpack.c.h.b16 %v875
        %v902 = vunpack.c.l.b16 %v876
        %v903 = vunpack.c.l.b16 %v877
        %v904 = vunpack.c.h.b16 %v877
        %v905 = vunpack.c.l.b16 %v878
        %v906 = vunpack.c.l.b16 %v879
        %v907 = vunpack.c.h.b16 %v879
        %v908 = vunpack.c.l.b16 %v880
        %v909 = vunpack.c.l.b16 %v881
        %v910 = vunpack.c.h.b16 %v881
        %v911 = vunpack.c.l.b16 %v882
        %v912 = vunpack.c.l.b16 %v883
        %v913 = vunpack.c.h.b16 %v883
        %v914 = vunpack.c.l.b16 %v884
        %v915 = vpack.c.b16 %v900, %v897
        %v916 = vpack.c.b16 %v901, %v898
        %v917 = vpack.c.b16 %v902, %v899
        %v918 = vpack.c.b16 %v906, %v903
        %v919 = vpack.c.b16 %v907, %v904
        %v920 = vpack.c.b16 %v908, %v905
        %v921 = vpack.c.b16 %v912, %v909
        %v922 = vpack.c.b16 %v913, %v910
        %v923 = vpack.c.b16 %v914, %v911
        %924 = vrot.lane.b32.xlu0 %v915, 111
        %v925 = vpop.permute.xlu0 %924
        %926 = vrot.lane.b32.xlu0 %v916, 111
        %v927 = vpop.permute.xlu0 %926
        %928 = vrot.lane.b32.xlu0 %v917, 111
        %v929 = vpop.permute.xlu0 %928
        %930 = vrot.lane.b32.xlu0 %v918, 111
        %v931 = vpop.permute.xlu0 %930
        %932 = vrot.lane.b32.xlu0 %v919, 111
        %v933 = vpop.permute.xlu0 %932
        %934 = vrot.lane.b32.xlu0 %v920, 111
        %v935 = vpop.permute.xlu0 %934
        %936 = vrot.lane.b32.xlu0 %v921, 111
        %v937 = vpop.permute.xlu0 %936
        %938 = vrot.lane.b32.xlu0 %v922, 111
        %v939 = vpop.permute.xlu0 %938
        %940 = vrot.lane.b32.xlu0 %v923, 111
        %v941 = vpop.permute.xlu0 %940
        %vm942 = vcmask 908288
        %v943 = vsel %vm942, %v925, %v927
        %v944 = vsel %vm942, %v927, %v929
        %v945 = vsel %vm942, %v931, %v933
        %v946 = vsel %vm942, %v933, %v935
        %v947 = vsel %vm942, %v937, %v939
        %v948 = vsel %vm942, %v939, %v941
        %955 = vst [vmem:[#allocation2 + $0xc0] sm:$0xff] %v943
        %956 = vst [vmem:[#allocation2 + $0xc8] sm:$0xff] %v944
        %957 = vst [vmem:[#allocation2 + $0xd0] sm:$0xff] %v945
        %958 = vst [vmem:[#allocation2 + $0xd8] sm:$0xff] %v946
        %959 = vst [vmem:[#allocation2 + $0xe0] sm:$0xff] %v947
        %960 = vst [vmem:[#allocation2 + $0xe8] sm:$0xff] %v948
        %v961 = vld [vmem:[%s283] sm:$0xff]
        %v962 = vld [vmem:[%s283 + $0x8] sm:$0xf]
        %v963 = vld [vmem:[%s283 + $0xc] sm:$0xff]
        %v964 = vld [vmem:[%s283 + $0x14] sm:$0xf]
        %v965 = vld [vmem:[%s283 + $0x18] sm:$0xff]
        %v966 = vld [vmem:[%s283 + $0x20] sm:$0xf]
        %v967 = vld [vmem:[%s283 + $0x24] sm:$0xff]
        %v968 = vld [vmem:[%s283 + $0x2c] sm:$0xf]
        %v969 = vld [vmem:[%s283 + $0x30] sm:$0xff]
        %v970 = vld [vmem:[%s283 + $0x38] sm:$0xf]
        %v971 = vld [vmem:[%s283 + $0x3c] sm:$0xff]
        %v972 = vld [vmem:[%s283 + $0x44] sm:$0xf]
        %v973 = vld [vmem:[%s2] sm:$0xa]
        %v976 = vunpack.c.l.s4 1983009808
        %v977 = vunpack.c.0.s8 %v976
        %v978 = vlaneseq
        %v979 = vshrl.u32 %v978, 7
        %v980 = vsub.s32 %v977, %v979
        %v981 = vrot.slane %v973, %v980
        %v982 = vcombine.high %v981, %v981
        %v984 = vpack.i.b16 %v981, %v981
        %v986 = vlaneseq
        %v987 = vshrl.u32 %v986, 7
        %v988 = vsub.s32 1, %v987
        %v989 = vrot.slane %v984, %v988
        %v991 = vpack.i.b16 %v982, %v982
        %v993 = vlaneseq
        %v994 = vshrl.u32 %v993, 7
        %v995 = vsub.s32 1, %v994
        %v996 = vrot.slane %v991, %v995
        %v999 = vunpack.c.l.b16 %v989
        %v1000 = vunpack.c.l.b16 %v996
        %v1001 = vpack.c.b16 %v1000, %v999
        %1002 = vrot.lane.b32.xlu0 %v1001, 18
        %v1003 = vpop.permute.xlu0 %1002
        %v1004 = vrot.slane %v1003, 4
        %vm1005 = vcmask 146432
        %v1006 = vsel %vm1005, %v1004, %v1003
        %v1009 = vmul.bf16 %v961, %v1006
        %v1010 = vmul.bf16 %v962, %v1004
        %v1011 = vmul.bf16 %v963, %v1006
        %v1012 = vmul.bf16 %v964, %v1004
        %v1013 = vmul.bf16 %v965, %v1006
        %v1014 = vmul.bf16 %v966, %v1004
        %v1015 = vmul.bf16 %v967, %v1006
        %v1016 = vmul.bf16 %v968, %v1004
        %v1017 = vmul.bf16 %v969, %v1006
        %v1018 = vmul.bf16 %v970, %v1004
        %v1019 = vmul.bf16 %v971, %v1006
        %v1020 = vmul.bf16 %v972, %v1004
        %v1033 = vunpack.c.l.b16 %v1009
        %v1034 = vunpack.c.h.b16 %v1009
        %v1035 = vunpack.c.l.b16 %v1010
        %v1036 = vunpack.c.l.b16 %v1011
        %v1037 = vunpack.c.h.b16 %v1011
        %v1038 = vunpack.c.l.b16 %v1012
        %v1039 = vunpack.c.l.b16 %v1013
        %v1040 = vunpack.c.h.b16 %v1013
        %v1041 = vunpack.c.l.b16 %v1014
        %v1042 = vunpack.c.l.b16 %v1015
        %v1043 = vunpack.c.h.b16 %v1015
        %v1044 = vunpack.c.l.b16 %v1016
        %v1045 = vunpack.c.l.b16 %v1017
        %v1046 = vunpack.c.h.b16 %v1017
        %v1047 = vunpack.c.l.b16 %v1018
        %v1048 = vunpack.c.l.b16 %v1019
        %v1049 = vunpack.c.h.b16 %v1019
        %v1050 = vunpack.c.l.b16 %v1020
        %v1051 = vpack.c.b16 %v1036, %v1033
        %v1052 = vpack.c.b16 %v1037, %v1034
        %v1053 = vpack.c.b16 %v1038, %v1035
        %v1054 = vpack.c.b16 %v1042, %v1039
        %v1055 = vpack.c.b16 %v1043, %v1040
        %v1056 = vpack.c.b16 %v1044, %v1041
        %v1057 = vpack.c.b16 %v1048, %v1045
        %v1058 = vpack.c.b16 %v1049, %v1046
        %v1059 = vpack.c.b16 %v1050, %v1047
        %1060 = vrot.lane.b32.xlu0 %v1051, 110
        %v1061 = vpop.permute.xlu0 %1060
        %1062 = vrot.lane.b32.xlu0 %v1052, 110
        %v1063 = vpop.permute.xlu0 %1062
        %1064 = vrot.lane.b32.xlu0 %v1053, 110
        %v1065 = vpop.permute.xlu0 %1064
        %1066 = vrot.lane.b32.xlu0 %v1054, 110
        %v1067 = vpop.permute.xlu0 %1066
        %1068 = vrot.lane.b32.xlu0 %v1055, 110
        %v1069 = vpop.permute.xlu0 %1068
        %1070 = vrot.lane.b32.xlu0 %v1056, 110
        %v1071 = vpop.permute.xlu0 %1070
        %1072 = vrot.lane.b32.xlu0 %v1057, 110
        %v1073 = vpop.permute.xlu0 %1072
        %1074 = vrot.lane.b32.xlu0 %v1058, 110
        %v1075 = vpop.permute.xlu0 %1074
        %1076 = vrot.lane.b32.xlu0 %v1059, 110
        %v1077 = vpop.permute.xlu0 %1076
        %vm1078 = vcmask 900096
        %v1079 = vsel %vm1078, %v1061, %v1063
        %v1080 = vsel %vm1078, %v1063, %v1065
        %v1081 = vsel %vm1078, %v1067, %v1069
        %v1082 = vsel %vm1078, %v1069, %v1071
        %v1083 = vsel %vm1078, %v1073, %v1075
        %v1084 = vsel %vm1078, %v1075, %v1077
        %1091 = vst [vmem:[#allocation2 + $0xf0] sm:$0xff] %v1079
        %1092 = vst [vmem:[#allocation2 + $0xf8] sm:$0xff] %v1080
        %1093 = vst [vmem:[#allocation2 + $0x100] sm:$0xff] %v1081
        %1094 = vst [vmem:[#allocation2 + $0x108] sm:$0xff] %v1082
        %1095 = vst [vmem:[#allocation2 + $0x110] sm:$0xff] %v1083
        %1096 = vst [vmem:[#allocation2 + $0x118] sm:$0xff] %v1084
        %v1097 = vld [vmem:[%s283] sm:$0xff]
        %v1098 = vld [vmem:[%s283 + $0x8] sm:$0xf]
        %v1099 = vld [vmem:[%s283 + $0xc] sm:$0xff]
        %v1100 = vld [vmem:[%s283 + $0x14] sm:$0xf]
        %v1101 = vld [vmem:[%s283 + $0x18] sm:$0xff]
        %v1102 = vld [vmem:[%s283 + $0x20] sm:$0xf]
        %v1103 = vld [vmem:[%s283 + $0x24] sm:$0xff]
        %v1104 = vld [vmem:[%s283 + $0x2c] sm:$0xf]
        %v1105 = vld [vmem:[%s283 + $0x30] sm:$0xff]
        %v1106 = vld [vmem:[%s283 + $0x38] sm:$0xf]
        %v1107 = vld [vmem:[%s283 + $0x3c] sm:$0xff]
        %v1108 = vld [vmem:[%s283 + $0x44] sm:$0xf]
        %v1109 = vld [vmem:[%s2] sm:$0x5]
        %v1112 = vunpack.c.l.s4 1983009808
        %v1113 = vunpack.c.0.s8 %v1112
        %v1114 = vlaneseq
        %v1115 = vshrl.u32 %v1114, 7
        %v1116 = vsub.s32 %v1113, %v1115
        %v1117 = vrot.slane %v1109, %v1116
        %v1118 = vcombine.high %v1117, %v1117
        %v1120 = vpack.i.b16 %v1117, %v1117
        %v1122 = vlaneseq
        %v1123 = vshrl.u32 %v1122, 7
        %v1124 = vsub.s32 0, %v1123
        %v1125 = vrot.slane %v1120, %v1124
        %v1127 = vpack.i.b16 %v1118, %v1118
        %v1129 = vlaneseq
        %v1130 = vshrl.u32 %v1129, 7
        %v1131 = vsub.s32 0, %v1130
        %v1132 = vrot.slane %v1127, %v1131
        %v1135 = vunpack.c.l.b16 %v1125
        %v1136 = vunpack.c.l.b16 %v1132
        %v1137 = vpack.c.b16 %v1136, %v1135
        %1138 = vrot.lane.b32.xlu0 %v1137, 32
        %v1139 = vpop.permute.xlu0 %1138
        %v1140 = vrot.slane %v1139, 4
        %vm1141 = vcmask 261120
        %v1142 = vsel %vm1141, %v1140, %v1139
        %v1145 = vmul.bf16 %v1097, %v1142
        %v1146 = vmul.bf16 %v1098, %v1140
        %v1147 = vmul.bf16 %v1099, %v1142
        %v1148 = vmul.bf16 %v1100, %v1140
        %v1149 = vmul.bf16 %v1101, %v1142
        %v1150 = vmul.bf16 %v1102, %v1140
        %v1151 = vmul.bf16 %v1103, %v1142
        %v1152 = vmul.bf16 %v1104, %v1140
        %v1153 = vmul.bf16 %v1105, %v1142
        %v1154 = vmul.bf16 %v1106, %v1140
        %v1155 = vmul.bf16 %v1107, %v1142
        %v1156 = vmul.bf16 %v1108, %v1140
        %v1169 = vunpack.c.l.b16 %v1145
        %v1170 = vunpack.c.h.b16 %v1145
        %v1171 = vunpack.c.l.b16 %v1146
        %v1172 = vunpack.c.l.b16 %v1147
        %v1173 = vunpack.c.h.b16 %v1147
        %v1174 = vunpack.c.l.b16 %v1148
        %v1175 = vunpack.c.l.b16 %v1149
        %v1176 = vunpack.c.h.b16 %v1149
        %v1177 = vunpack.c.l.b16 %v1150
        %v1178 = vunpack.c.l.b16 %v1151
        %v1179 = vunpack.c.h.b16 %v1151
        %v1180 = vunpack.c.l.b16 %v1152
        %v1181 = vunpack.c.l.b16 %v1153
        %v1182 = vunpack.c.h.b16 %v1153
        %v1183 = vunpack.c.l.b16 %v1154
        %v1184 = vunpack.c.l.b16 %v1155
        %v1185 = vunpack.c.h.b16 %v1155
        %v1186 = vunpack.c.l.b16 %v1156
        %v1187 = vpack.c.b16 %v1172, %v1169
        %v1188 = vpack.c.b16 %v1173, %v1170
        %v1189 = vpack.c.b16 %v1174, %v1171
        %v1190 = vpack.c.b16 %v1178, %v1175
        %v1191 = vpack.c.b16 %v1179, %v1176
        %v1192 = vpack.c.b16 %v1180, %v1177
        %v1193 = vpack.c.b16 %v1184, %v1181
        %v1194 = vpack.c.b16 %v1185, %v1182
        %v1195 = vpack.c.b16 %v1186, %v1183
        %1196 = vrot.lane.b32.xlu0 %v1187, 96
        %v1197 = vpop.permute.xlu0 %1196
        %1198 = vrot.lane.b32.xlu0 %v1188, 96
        %v1199 = vpop.permute.xlu0 %1198
        %1200 = vrot.lane.b32.xlu0 %v1189, 96
        %v1201 = vpop.permute.xlu0 %1200
        %1202 = vrot.lane.b32.xlu0 %v1190, 96
        %v1203 = vpop.permute.xlu0 %1202
        %1204 = vrot.lane.b32.xlu0 %v1191, 96
        %v1205 = vpop.permute.xlu0 %1204
        %1206 = vrot.lane.b32.xlu0 %v1192, 96
        %v1207 = vpop.permute.xlu0 %1206
        %1208 = vrot.lane.b32.xlu0 %v1193, 96
        %v1209 = vpop.permute.xlu0 %1208
        %1210 = vrot.lane.b32.xlu0 %v1194, 96
        %v1211 = vpop.permute.xlu0 %1210
        %1212 = vrot.lane.b32.xlu0 %v1195, 96
        %v1213 = vpop.permute.xlu0 %1212
        %vm1214 = vcmask 785408
        %v1215 = vsel %vm1214, %v1197, %v1199
        %v1216 = vsel %vm1214, %v1199, %v1201
        %v1217 = vsel %vm1214, %v1203, %v1205
        %v1218 = vsel %vm1214, %v1205, %v1207
        %v1219 = vsel %vm1214, %v1209, %v1211
        %v1220 = vsel %vm1214, %v1211, %v1213
        %1227 = vst [vmem:[#allocation2 + $0x120] sm:$0xff] %v1215
        %1228 = vst [vmem:[#allocation2 + $0x128] sm:$0xff] %v1216
        %1229 = vst [vmem:[#allocation2 + $0x130] sm:$0xff] %v1217
        %1230 = vst [vmem:[#allocation2 + $0x138] sm:$0xff] %v1218
        %1231 = vst [vmem:[#allocation2 + $0x140] sm:$0xff] %v1219
        %1232 = vst [vmem:[#allocation2 + $0x148] sm:$0xff] %v1220
        %v1233 = vld [vmem:[%s283] sm:$0xff]
        %v1234 = vld [vmem:[%s283 + $0x8] sm:$0xf]
        %v1235 = vld [vmem:[%s283 + $0xc] sm:$0xff]
        %v1236 = vld [vmem:[%s283 + $0x14] sm:$0xf]
        %v1237 = vld [vmem:[%s283 + $0x18] sm:$0xff]
        %v1238 = vld [vmem:[%s283 + $0x20] sm:$0xf]
        %v1239 = vld [vmem:[%s283 + $0x24] sm:$0xff]
        %v1240 = vld [vmem:[%s283 + $0x2c] sm:$0xf]
        %v1241 = vld [vmem:[%s283 + $0x30] sm:$0xff]
        %v1242 = vld [vmem:[%s283 + $0x38] sm:$0xf]
        %v1243 = vld [vmem:[%s283 + $0x3c] sm:$0xff]
        %v1244 = vld [vmem:[%s283 + $0x44] sm:$0xf]
        %v1245 = vld [vmem:[%s2] sm:$0x5]
        %v1248 = vunpack.c.l.s4 1983009808
        %v1249 = vunpack.c.0.s8 %v1248
        %v1250 = vlaneseq
        %v1251 = vshrl.u32 %v1250, 7
        %v1252 = vsub.s32 %v1249, %v1251
        %v1253 = vrot.slane %v1245, %v1252
        %v1254 = vcombine.high %v1253, %v1253
        %v1256 = vshrl.u32 %v1253, 16
        %v1257 = vpack.i.b16 %v1256, %v1256
        %v1259 = vlaneseq
        %v1260 = vshrl.u32 %v1259, 7
        %v1261 = vsub.s32 0, %v1260
        %v1262 = vrot.slane %v1257, %v1261
        %v1264 = vshrl.u32 %v1254, 16
        %v1265 = vpack.i.b16 %v1264, %v1264
        %v1267 = vlaneseq
        %v1268 = vshrl.u32 %v1267, 7
        %v1269 = vsub.s32 0, %v1268
        %v1270 = vrot.slane %v1265, %v1269
        %v1273 = vunpack.c.l.b16 %v1262
        %v1274 = vunpack.c.l.b16 %v1270
        %v1275 = vpack.c.b16 %v1274, %v1273
        %1276 = vrot.lane.b32.xlu0 %v1275, 33
        %v1277 = vpop.permute.xlu0 %1276
        %v1278 = vrot.slane %v1277, 4
        %vm1279 = vcmask 269312
        %v1280 = vsel %vm1279, %v1278, %v1277
        %v1283 = vmul.bf16 %v1233, %v1280
        %v1284 = vmul.bf16 %v1234, %v1278
        %v1285 = vmul.bf16 %v1235, %v1280
        %v1286 = vmul.bf16 %v1236, %v1278
        %v1287 = vmul.bf16 %v1237, %v1280
        %v1288 = vmul.bf16 %v1238, %v1278
        %v1289 = vmul.bf16 %v1239, %v1280
        %v1290 = vmul.bf16 %v1240, %v1278
        %v1291 = vmul.bf16 %v1241, %v1280
        %v1292 = vmul.bf16 %v1242, %v1278
        %v1293 = vmul.bf16 %v1243, %v1280
        %v1294 = vmul.bf16 %v1244, %v1278
        %v1307 = vunpack.c.l.b16 %v1283
        %v1308 = vunpack.c.h.b16 %v1283
        %v1309 = vunpack.c.l.b16 %v1284
        %v1310 = vunpack.c.l.b16 %v1285
        %v1311 = vunpack.c.h.b16 %v1285
        %v1312 = vunpack.c.l.b16 %v1286
        %v1313 = vunpack.c.l.b16 %v1287
        %v1314 = vunpack.c.h.b16 %v1287
        %v1315 = vunpack.c.l.b16 %v1288
        %v1316 = vunpack.c.l.b16 %v1289
        %v1317 = vunpack.c.h.b16 %v1289
        %v1318 = vunpack.c.l.b16 %v1290
        %v1319 = vunpack.c.l.b16 %v1291
        %v1320 = vunpack.c.h.b16 %v1291
        %v1321 = vunpack.c.l.b16 %v1292
        %v1322 = vunpack.c.l.b16 %v1293
        %v1323 = vunpack.c.h.b16 %v1293
        %v1324 = vunpack.c.l.b16 %v1294
        %v1325 = vpack.c.b16 %v1310, %v1307
        %v1326 = vpack.c.b16 %v1311, %v1308
        %v1327 = vpack.c.b16 %v1312, %v1309
        %v1328 = vpack.c.b16 %v1316, %v1313
        %v1329 = vpack.c.b16 %v1317, %v1314
        %v1330 = vpack.c.b16 %v1318, %v1315
        %v1331 = vpack.c.b16 %v1322, %v1319
        %v1332 = vpack.c.b16 %v1323, %v1320
        %v1333 = vpack.c.b16 %v1324, %v1321
        %1334 = vrot.lane.b32.xlu0 %v1325, 95
        %v1335 = vpop.permute.xlu0 %1334
        %1336 = vrot.lane.b32.xlu0 %v1326, 95
        %v1337 = vpop.permute.xlu0 %1336
        %1338 = vrot.lane.b32.xlu0 %v1327, 95
        %v1339 = vpop.permute.xlu0 %1338
        %1340 = vrot.lane.b32.xlu0 %v1328, 95
        %v1341 = vpop.permute.xlu0 %1340
        %1342 = vrot.lane.b32.xlu0 %v1329, 95
        %v1343 = vpop.permute.xlu0 %1342
        %1344 = vrot.lane.b32.xlu0 %v1330, 95
        %v1345 = vpop.permute.xlu0 %1344
        %1346 = vrot.lane.b32.xlu0 %v1331, 95
        %v1347 = vpop.permute.xlu0 %1346
        %1348 = vrot.lane.b32.xlu0 %v1332, 95
        %v1349 = vpop.permute.xlu0 %1348
        %1350 = vrot.lane.b32.xlu0 %v1333, 95
        %v1351 = vpop.permute.xlu0 %1350
        %vm1352 = vcmask 777216
        %v1353 = vsel %vm1352, %v1335, %v1337
        %v1354 = vsel %vm1352, %v1337, %v1339
        %v1355 = vsel %vm1352, %v1341, %v1343
        %v1356 = vsel %vm1352, %v1343, %v1345
        %v1357 = vsel %vm1352, %v1347, %v1349
        %v1358 = vsel %vm1352, %v1349, %v1351
        %1365 = vst [vmem:[#allocation2 + $0x150] sm:$0xff] %v1353
        %1366 = vst [vmem:[#allocation2 + $0x158] sm:$0xff] %v1354
        %1367 = vst [vmem:[#allocation2 + $0x160] sm:$0xff] %v1355
        %1368 = vst [vmem:[#allocation2 + $0x168] sm:$0xff] %v1356
        %1369 = vst [vmem:[#allocation2 + $0x170] sm:$0xff] %v1357
        %1370 = vst [vmem:[#allocation2 + $0x178] sm:$0xff] %v1358
        %v1371 = vld [vmem:[%s283] sm:$0xff]
        %v1372 = vld [vmem:[%s283 + $0x8] sm:$0xf]
        %v1373 = vld [vmem:[%s283 + $0xc] sm:$0xff]
        %v1374 = vld [vmem:[%s283 + $0x14] sm:$0xf]
        %v1375 = vld [vmem:[%s283 + $0x18] sm:$0xff]
        %v1376 = vld [vmem:[%s283 + $0x20] sm:$0xf]
        %v1377 = vld [vmem:[%s283 + $0x24] sm:$0xff]
        %v1378 = vld [vmem:[%s283 + $0x2c] sm:$0xf]
        %v1379 = vld [vmem:[%s283 + $0x30] sm:$0xff]
        %v1380 = vld [vmem:[%s283 + $0x38] sm:$0xf]
        %v1381 = vld [vmem:[%s283 + $0x3c] sm:$0xff]
        %v1382 = vld [vmem:[%s283 + $0x44] sm:$0xf]
        %v1383 = vld [vmem:[%s2] sm:$0xa]
        %v1386 = vunpack.c.l.s4 1983009808
        %v1387 = vunpack.c.0.s8 %v1386
        %v1388 = vlaneseq
        %v1389 = vshrl.u32 %v1388, 7
        %v1390 = vsub.s32 %v1387, %v1389
        %v1391 = vrot.slane %v1383, %v1390
        %v1392 = vcombine.high %v1391, %v1391
        %v1394 = vpack.i.b16 %v1391, %v1391
        %v1396 = vlaneseq
        %v1397 = vshrl.u32 %v1396, 7
        %v1398 = vsub.s32 1, %v1397
        %v1399 = vrot.slane %v1394, %v1398
        %v1401 = vpack.i.b16 %v1392, %v1392
        %v1403 = vlaneseq
        %v1404 = vshrl.u32 %v1403, 7
        %v1405 = vsub.s32 1, %v1404
        %v1406 = vrot.slane %v1401, %v1405
        %v1409 = vunpack.c.l.b16 %v1399
        %v1410 = vunpack.c.l.b16 %v1406
        %v1411 = vpack.c.b16 %v1410, %v1409
        %1412 = vrot.lane.b32.xlu0 %v1411, 34
        %v1413 = vpop.permute.xlu0 %1412
        %v1414 = vrot.slane %v1413, 4
        %vm1415 = vcmask 277504
        %v1416 = vsel %vm1415, %v1414, %v1413
        %v1419 = vmul.bf16 %v1371, %v1416
        %v1420 = vmul.bf16 %v1372, %v1414
        %v1421 = vmul.bf16 %v1373, %v1416
        %v1422 = vmul.bf16 %v1374, %v1414
        %v1423 = vmul.bf16 %v1375, %v1416
        %v1424 = vmul.bf16 %v1376, %v1414
        %v1425 = vmul.bf16 %v1377, %v1416
        %v1426 = vmul.bf16 %v1378, %v1414
        %v1427 = vmul.bf16 %v1379, %v1416
        %v1428 = vmul.bf16 %v1380, %v1414
        %v1429 = vmul.bf16 %v1381, %v1416
        %v1430 = vmul.bf16 %v1382, %v1414
        %v1443 = vunpack.c.l.b16 %v1419
        %v1444 = vunpack.c.h.b16 %v1419
        %v1445 = vunpack.c.l.b16 %v1420
        %v1446 = vunpack.c.l.b16 %v1421
        %v1447 = vunpack.c.h.b16 %v1421
        %v1448 = vunpack.c.l.b16 %v1422
        %v1449 = vunpack.c.l.b16 %v1423
        %v1450 = vunpack.c.h.b16 %v1423
        %v1451 = vunpack.c.l.b16 %v1424
        %v1452 = vunpack.c.l.b16 %v1425
        %v1453 = vunpack.c.h.b16 %v1425
        %v1454 = vunpack.c.l.b16 %v1426
        %v1455 = vunpack.c.l.b16 %v1427
        %v1456 = vunpack.c.h.b16 %v1427
        %v1457 = vunpack.c.l.b16 %v1428
        %v1458 = vunpack.c.l.b16 %v1429
        %v1459 = vunpack.c.h.b16 %v1429
        %v1460 = vunpack.c.l.b16 %v1430
        %v1461 = vpack.c.b16 %v1446, %v1443
        %v1462 = vpack.c.b16 %v1447, %v1444
        %v1463 = vpack.c.b16 %v1448, %v1445
        %v1464 = vpack.c.b16 %v1452, %v1449
        %v1465 = vpack.c.b16 %v1453, %v1450
        %v1466 = vpack.c.b16 %v1454, %v1451
        %v1467 = vpack.c.b16 %v1458, %v1455
        %v1468 = vpack.c.b16 %v1459, %v1456
        %v1469 = vpack.c.b16 %v1460, %v1457
        %1470 = vrot.lane.b32.xlu0 %v1461, 94
        %v1471 = vpop.permute.xlu0 %1470
        %1472 = vrot.lane.b32.xlu0 %v1462, 94
        %v1473 = vpop.permute.xlu0 %1472
        %1474 = vrot.lane.b32.xlu0 %v1463, 94
        %v1475 = vpop.permute.xlu0 %1474
        %1476 = vrot.lane.b32.xlu0 %v1464, 94
        %v1477 = vpop.permute.xlu0 %1476
        %1478 = vrot.lane.b32.xlu0 %v1465, 94
        %v1479 = vpop.permute.xlu0 %1478
        %1480 = vrot.lane.b32.xlu0 %v1466, 94
        %v1481 = vpop.permute.xlu0 %1480
        %1482 = vrot.lane.b32.xlu0 %v1467, 94
        %v1483 = vpop.permute.xlu0 %1482
        %1484 = vrot.lane.b32.xlu0 %v1468, 94
        %v1485 = vpop.permute.xlu0 %1484
        %1486 = vrot.lane.b32.xlu0 %v1469, 94
        %v1487 = vpop.permute.xlu0 %1486
        %vm1488 = vcmask 769024
        %v1489 = vsel %vm1488, %v1471, %v1473
        %v1490 = vsel %vm1488, %v1473, %v1475
        %v1491 = vsel %vm1488, %v1477, %v1479
        %v1492 = vsel %vm1488, %v1479, %v1481
        %v1493 = vsel %vm1488, %v1483, %v1485
        %v1494 = vsel %vm1488, %v1485, %v1487
        %1501 = vst [vmem:[#allocation2 + $0x180] sm:$0xff] %v1489
        %1502 = vst [vmem:[#allocation2 + $0x188] sm:$0xff] %v1490
        %1503 = vst [vmem:[#allocation2 + $0x190] sm:$0xff] %v1491
        %1504 = vst [vmem:[#allocation2 + $0x198] sm:$0xff] %v1492
        %1505 = vst [vmem:[#allocation2 + $0x1a0] sm:$0xff] %v1493
        %1506 = vst [vmem:[#allocation2 + $0x1a8] sm:$0xff] %v1494
        %v1507 = vlaneseq
        %v1508 = vshrl.u32 %v1507, 7
        %v1509 = vadd.s32 %v1508, 8
        %v1510 = vadd.s32 %v1508, 16
        %v1511 = vadd.s32 %v1508, 24
        %v1512 = vadd.s32 %v1508, 32
        %v1513 = vadd.s32 %v1508, 40
        %v1514 = vadd.s32 %v1508, 48
        %v1515 = vadd.s32 %v1508, 56
        %v1516 = vadd.s32 %v1508, 64
        %v1517 = vadd.s32 %v1508, 72
        %vm1518 = vcmp.eq.s32.totalorder %v1508, 0
        %vm1519 = vcmp.eq.s32.totalorder %v1509, 0
        %vm1520 = vcmp.eq.s32.totalorder %v1510, 0
        %vm1521 = vcmp.eq.s32.totalorder %v1511, 0
        %vm1522 = vcmp.eq.s32.totalorder %v1512, 0
        %vm1523 = vcmp.eq.s32.totalorder %v1513, 0
        %vm1524 = vcmp.eq.s32.totalorder %v1514, 0
        %vm1525 = vcmp.eq.s32.totalorder %v1515, 0
        %vm1526 = vcmp.eq.s32.totalorder %v1516, 0
        %vm1527 = vcmp.eq.s32.totalorder %v1517, 0
        %v1528 = vsel %vm1518, 1.0, 0.0
        %v1529 = vsel %vm1519, 1.0, 0.0
        %v1530 = vsel %vm1520, 1.0, 0.0
        %v1531 = vsel %vm1521, 1.0, 0.0
        %v1532 = vsel %vm1522, 1.0, 0.0
        %v1533 = vsel %vm1523, 1.0, 0.0
        %v1534 = vsel %vm1524, 1.0, 0.0
        %v1535 = vsel %vm1525, 1.0, 0.0
        %v1536 = vsel %vm1526, 1.0, 0.0
        %v1537 = vsel %vm1527, 1.0, 0.0
        %v1538 = vpack.c.bf16 %v1529, %v1528
        %v1539 = vpack.c.bf16 %v1531, %v1530
        %v1540 = vpack.c.bf16 %v1533, %v1532
        %v1541 = vpack.c.bf16 %v1535, %v1534
        %v1542 = vpack.c.bf16 %v1537, %v1536
        %1543 = vst [vmem:[#allocation2 + $0x1b0] sm:$0xff] %v1538
        %1544 = vst [vmem:[#allocation2 + $0x1b8] sm:$0xff] %v1538
        %1545 = vst [vmem:[#allocation2 + $0x1c0] sm:$0xff] %v1539
        %1546 = vst [vmem:[#allocation2 + $0x1c8] sm:$0xff] %v1539
        %1547 = vst [vmem:[#allocation2 + $0x1d0] sm:$0xff] %v1540
        %1548 = vst [vmem:[#allocation2 + $0x1d8] sm:$0xff] %v1540
        %1549 = vst [vmem:[#allocation2 + $0x1e0] sm:$0xff] %v1541
        %1550 = vst [vmem:[#allocation2 + $0x1e8] sm:$0xff] %v1541
        %1551 = vst [vmem:[#allocation2 + $0x1f0] sm:$0xff] %v1542
        %1552 = vst [vmem:[#allocation2 + $0x1f8] sm:$0xff] %v1542
        %v1553 = vld [vmem:[#allocation9] sm:$0xff]
        %v1554 = vld [vmem:[#allocation9 + $0x8] sm:$0xff]
        %v1555 = vld [vmem:[#allocation9 + $0x10] sm:$0xff]
        %v1556 = vld [vmem:[#allocation9 + $0x18] sm:$0xff]
        %v1557 = vld [vmem:[#allocation9 + $0x20] sm:$0xff]
        %v1558 = vld [vmem:[#allocation9 + $0x28] sm:$0xff]
        %v1559 = vld [vmem:[#allocation9 + $0x30] sm:$0xff]
        %v1560 = vld [vmem:[#allocation9 + $0x38] sm:$0xff]
        %v1561 = vld [vmem:[#allocation9 + $0x40] sm:$0xff]
        %v1562 = vld [vmem:[#allocation9 + $0x48] sm:$0xff]
        %v1563 = vld [vmem:[#allocation9 + $0x50] sm:$0xff]
        %v1564 = vld [vmem:[#allocation9 + $0x58] sm:$0xff]
        %v1565 = vld [vmem:[#allocation9 + $0x60] sm:$0xff]
        %v1566 = vld [vmem:[#allocation9 + $0x68] sm:$0xff]
        %v1567 = vld [vmem:[#allocation9 + $0x70] sm:$0xff]
        %v1568 = vld [vmem:[#allocation9 + $0x78] sm:$0xff]
        %v1569 = vld [vmem:[#allocation9 + $0x80] sm:$0xff]
        %v1570 = vld [vmem:[#allocation9 + $0x88] sm:$0xff]
        %v1571 = vld [vmem:[#allocation9 + $0x90] sm:$0xff]
        %v1572 = vld [vmem:[#allocation9 + $0x98] sm:$0xff]
        %v1573 = vld [vmem:[#allocation9 + $0xa0] sm:$0xff]
        %v1574 = vld [vmem:[#allocation9 + $0xa8] sm:$0xff]
        %v1575 = vld [vmem:[#allocation9 + $0xb0] sm:$0xff]
        %v1576 = vld [vmem:[#allocation9 + $0xb8] sm:$0xff]
        %v1577 = vld [vmem:[#allocation9 + $0xc0] sm:$0xff]
        %v1578 = vld [vmem:[#allocation9 + $0xc8] sm:$0xff]
        %v1579 = vld [vmem:[#allocation9 + $0xd0] sm:$0xff]
        %v1580 = vld [vmem:[#allocation9 + $0xd8] sm:$0xff]
        %v1581 = vld [vmem:[#allocation9 + $0xe0] sm:$0xff]
        %v1582 = vld [vmem:[#allocation9 + $0xe8] sm:$0xff]
        %v1583 = vld [vmem:[#allocation9 + $0xf0] sm:$0xff]
        %v1584 = vld [vmem:[#allocation9 + $0xf8] sm:$0xff]
        %v1585 = vld [vmem:[#allocation2] sm:$0xff]
        %v1586 = vld [vmem:[#allocation2 + $0x8] sm:$0xff]
        %v1587 = vld [vmem:[#allocation2 + $0x10] sm:$0xff]
        %v1588 = vld [vmem:[#allocation2 + $0x18] sm:$0xff]
        %v1589 = vld [vmem:[#allocation2 + $0x20] sm:$0xff]
        %v1590 = vld [vmem:[#allocation2 + $0x28] sm:$0xff]
        %v1591 = vld [vmem:[#allocation2 + $0x30] sm:$0xff]
        %v1592 = vld [vmem:[#allocation2 + $0x38] sm:$0xff]
        %v1593 = vld [vmem:[#allocation2 + $0x40] sm:$0xff]
        %v1594 = vld [vmem:[#allocation2 + $0x48] sm:$0xff]
        %v1595 = vld [vmem:[#allocation2 + $0x50] sm:$0xff]
        %v1596 = vld [vmem:[#allocation2 + $0x58] sm:$0xff]
        %v1597 = vld [vmem:[#allocation2 + $0x60] sm:$0xff]
        %v1598 = vld [vmem:[#allocation2 + $0x68] sm:$0xff]
        %v1599 = vld [vmem:[#allocation2 + $0x70] sm:$0xff]
        %v1600 = vld [vmem:[#allocation2 + $0x78] sm:$0xff]
        %v1601 = vld [vmem:[#allocation2 + $0x80] sm:$0xff]
        %v1602 = vld [vmem:[#allocation2 + $0x88] sm:$0xff]
        %v1603 = vld [vmem:[#allocation2 + $0x90] sm:$0xff]
        %v1604 = vld [vmem:[#allocation2 + $0x98] sm:$0xff]
        %v1605 = vld [vmem:[#allocation2 + $0xa0] sm:$0xff]
        %v1606 = vld [vmem:[#allocation2 + $0xa8] sm:$0xff]
        %v1607 = vld [vmem:[#allocation2 + $0xb0] sm:$0xff]
        %v1608 = vld [vmem:[#allocation2 + $0xb8] sm:$0xff]
        %v1609 = vld [vmem:[#allocation2 + $0xc0] sm:$0xff]
        %v1610 = vld [vmem:[#allocation2 + $0xc8] sm:$0xff]
        %v1611 = vld [vmem:[#allocation2 + $0xd0] sm:$0xff]
        %v1612 = vld [vmem:[#allocation2 + $0xd8] sm:$0xff]
        %v1613 = vld [vmem:[#allocation2 + $0xe0] sm:$0xff]
        %v1614 = vld [vmem:[#allocation2 + $0xe8] sm:$0xff]
        %v1615 = vld [vmem:[#allocation2 + $0xf0] sm:$0xff]
        %v1616 = vld [vmem:[#allocation2 + $0xf8] sm:$0xff]
        %v1617 = vld [vmem:[#allocation2 + $0x100] sm:$0xff]
        %v1618 = vld [vmem:[#allocation2 + $0x108] sm:$0xff]
        %v1619 = vld [vmem:[#allocation2 + $0x110] sm:$0xff]
        %v1620 = vld [vmem:[#allocation2 + $0x118] sm:$0xff]
        %v1621 = vld [vmem:[#allocation2 + $0x120] sm:$0xff]
        %v1622 = vld [vmem:[#allocation2 + $0x128] sm:$0xff]
        %v1623 = vld [vmem:[#allocation2 + $0x130] sm:$0xff]
        %v1624 = vld [vmem:[#allocation2 + $0x138] sm:$0xff]
        %v1625 = vld [vmem:[#allocation2 + $0x140] sm:$0xff]
        %v1626 = vld [vmem:[#allocation2 + $0x148] sm:$0xff]
        %v1627 = vld [vmem:[#allocation2 + $0x150] sm:$0xff]
        %v1628 = vld [vmem:[#allocation2 + $0x158] sm:$0xff]
        %v1629 = vld [vmem:[#allocation2 + $0x160] sm:$0xff]
        %v1630 = vld [vmem:[#allocation2 + $0x168] sm:$0xff]
        %v1631 = vld [vmem:[#allocation2 + $0x170] sm:$0xff]
        %v1632 = vld [vmem:[#allocation2 + $0x178] sm:$0xff]
        %v1633 = vld [vmem:[#allocation2 + $0x180] sm:$0xff]
        %v1634 = vld [vmem:[#allocation2 + $0x188] sm:$0xff]
        %v1635 = vld [vmem:[#allocation2 + $0x190] sm:$0xff]
        %v1636 = vld [vmem:[#allocation2 + $0x198] sm:$0xff]
        %v1637 = vld [vmem:[#allocation2 + $0x1a0] sm:$0xff]
        %v1638 = vld [vmem:[#allocation2 + $0x1a8] sm:$0xff]
        %v1639 = vld [vmem:[#allocation2 + $0x1b0] sm:$0xff]
        %v1640 = vld [vmem:[#allocation2 + $0x1b8] sm:$0xff]
        %v1641 = vld [vmem:[#allocation2 + $0x1c0] sm:$0xff]
        %v1642 = vld [vmem:[#allocation2 + $0x1c8] sm:$0xff]
        %v1643 = vld [vmem:[#allocation2 + $0x1d0] sm:$0xff]
        %v1644 = vld [vmem:[#allocation2 + $0x1d8] sm:$0xff]
        %v1645 = vld [vmem:[#allocation2 + $0x1e0] sm:$0xff]
        %v1646 = vld [vmem:[#allocation2 + $0x1e8] sm:$0xff]
        %v1647 = vld [vmem:[#allocation2 + $0x1f0] sm:$0xff]
        %v1648 = vld [vmem:[#allocation2 + $0x1f8] sm:$0xff]
        %v1681 = vunpack.c.l.b16 %v1553
        %v1682 = vunpack.c.h.b16 %v1553
        %v1683 = vunpack.c.l.b16 %v1554
        %v1684 = vunpack.c.h.b16 %v1554
        %v1685 = vunpack.c.l.b16 %v1555
        %v1686 = vunpack.c.h.b16 %v1555
        %v1687 = vunpack.c.l.b16 %v1556
        %v1688 = vunpack.c.h.b16 %v1556
        %v1689 = vunpack.c.l.b16 %v1557
        %v1690 = vunpack.c.h.b16 %v1557
        %v1691 = vunpack.c.l.b16 %v1558
        %v1692 = vunpack.c.h.b16 %v1558
        %v1693 = vunpack.c.l.b16 %v1559
        %v1694 = vunpack.c.h.b16 %v1559
        %v1695 = vunpack.c.l.b16 %v1560
        %v1696 = vunpack.c.h.b16 %v1560
        %v1697 = vunpack.c.l.b16 %v1561
        %v1698 = vunpack.c.h.b16 %v1561
        %v1699 = vunpack.c.l.b16 %v1562
        %v1700 = vunpack.c.h.b16 %v1562
        %v1701 = vunpack.c.l.b16 %v1563
        %v1702 = vunpack.c.h.b16 %v1563
        %v1703 = vunpack.c.l.b16 %v1564
        %v1704 = vunpack.c.h.b16 %v1564
        %v1705 = vunpack.c.l.b16 %v1565
        %v1706 = vunpack.c.h.b16 %v1565
        %v1707 = vunpack.c.l.b16 %v1566
        %v1708 = vunpack.c.h.b16 %v1566
        %v1709 = vunpack.c.l.b16 %v1567
        %v1710 = vunpack.c.h.b16 %v1567
        %v1711 = vunpack.c.l.b16 %v1568
        %v1712 = vunpack.c.h.b16 %v1568
        %v1713 = vunpack.c.l.b16 %v1569
        %v1714 = vunpack.c.h.b16 %v1569
        %v1715 = vunpack.c.l.b16 %v1570
        %v1716 = vunpack.c.h.b16 %v1570
        %v1717 = vunpack.c.l.b16 %v1571
        %v1718 = vunpack.c.h.b16 %v1571
        %v1719 = vunpack.c.l.b16 %v1572
        %v1720 = vunpack.c.h.b16 %v1572
        %v1721 = vunpack.c.l.b16 %v1573
        %v1722 = vunpack.c.h.b16 %v1573
        %v1723 = vunpack.c.l.b16 %v1574
        %v1724 = vunpack.c.h.b16 %v1574
        %v1725 = vunpack.c.l.b16 %v1575
        %v1726 = vunpack.c.h.b16 %v1575
        %v1727 = vunpack.c.l.b16 %v1576
        %v1728 = vunpack.c.h.b16 %v1576
        %v1729 = vunpack.c.l.b16 %v1577
        %v1730 = vunpack.c.h.b16 %v1577
        %v1731 = vunpack.c.l.b16 %v1578
        %v1732 = vunpack.c.h.b16 %v1578
        %v1733 = vunpack.c.l.b16 %v1579
        %v1734 = vunpack.c.h.b16 %v1579
        %v1735 = vunpack.c.l.b16 %v1580
        %v1736 = vunpack.c.h.b16 %v1580
        %v1737 = vunpack.c.l.b16 %v1581
        %v1738 = vunpack.c.h.b16 %v1581
        %v1739 = vunpack.c.l.b16 %v1582
        %v1740 = vunpack.c.h.b16 %v1582
        %v1741 = vunpack.c.l.b16 %v1583
        %v1742 = vunpack.c.h.b16 %v1583
        %v1743 = vunpack.c.l.b16 %v1584
        %v1744 = vunpack.c.h.b16 %v1584
        %v1745 = vpack.c.b16 %v1685, %v1681
        %v1746 = vpack.c.b16 %v1686, %v1682
        %v1747 = vpack.c.b16 %v1687, %v1683
        %v1748 = vpack.c.b16 %v1688, %v1684
        %v1749 = vpack.c.b16 %v1693, %v1689
        %v1750 = vpack.c.b16 %v1694, %v1690
        %v1751 = vpack.c.b16 %v1695, %v1691
        %v1752 = vpack.c.b16 %v1696, %v1692
        %v1753 = vpack.c.b16 %v1701, %v1697
        %v1754 = vpack.c.b16 %v1702, %v1698
        %v1755 = vpack.c.b16 %v1703, %v1699
        %v1756 = vpack.c.b16 %v1704, %v1700
        %v1757 = vpack.c.b16 %v1709, %v1705
        %v1758 = vpack.c.b16 %v1710, %v1706
        %v1759 = vpack.c.b16 %v1711, %v1707
        %v1760 = vpack.c.b16 %v1712, %v1708
        %v1761 = vpack.c.b16 %v1717, %v1713
        %v1762 = vpack.c.b16 %v1718, %v1714
        %v1763 = vpack.c.b16 %v1719, %v1715
        %v1764 = vpack.c.b16 %v1720, %v1716
        %v1765 = vpack.c.b16 %v1725, %v1721
        %v1766 = vpack.c.b16 %v1726, %v1722
        %v1767 = vpack.c.b16 %v1727, %v1723
        %v1768 = vpack.c.b16 %v1728, %v1724
        %v1769 = vpack.c.b16 %v1733, %v1729
        %v1770 = vpack.c.b16 %v1734, %v1730
        %v1771 = vpack.c.b16 %v1735, %v1731
        %v1772 = vpack.c.b16 %v1736, %v1732
        %v1773 = vpack.c.b16 %v1741, %v1737
        %v1774 = vpack.c.b16 %v1742, %v1738
        %v1775 = vpack.c.b16 %v1743, %v1739
        %v1776 = vpack.c.b16 %v1744, %v1740
        %1809 = vmatprep.subr.bf16.mxu0 %v1586
        %1810 = vmatpush1.bf16.msra.mxu0 %v1585
        %1811 = vmatprep.subr.bf16.mxu0 %v1588
        %1812 = vmatpush1.bf16.msra.mxu0 %v1587
        %1813 = vmatprep.subr.bf16.mxu0 %v1590
        %1814 = vmatpush1.bf16.msra.mxu0 %v1589
        %1815 = vmatprep.subr.bf16.mxu0 %v1592
        %1816 = vmatpush1.bf16.msra.mxu0 %v1591
        %1817 = vmatprep.subr.bf16.mxu0 %v1594
        %1818 = vmatpush1.bf16.msra.mxu0 %v1593
        %1819 = vmatprep.subr.bf16.mxu0 %v1596
        %1820 = vmatpush1.bf16.msra.mxu0 %v1595
        %1821 = vmatprep.subr.bf16.mxu0 %v1598
        %1822 = vmatpush1.bf16.msra.mxu0 %v1597
        %1823 = vmatprep.subr.bf16.mxu0 %v1600
        %1824 = vmatpush1.bf16.msra.mxu0 %v1599
        %1825 = vmatprep.subr.bf16.mxu0 %v1602
        %1826 = vmatpush1.bf16.msra.mxu0 %v1601
        %1827 = vmatprep.subr.bf16.mxu0 %v1604
        %1828 = vmatpush1.bf16.msra.mxu0 %v1603
        %1829 = vmatprep.subr.bf16.mxu0 %v1606
        %1830 = vmatpush1.bf16.msra.mxu0 %v1605
        %1831 = vmatprep.subr.bf16.mxu0 %v1608
        %1832 = vmatpush1.bf16.msra.mxu0 %v1607
        %1833 = vmatprep.subr.bf16.mxu0 %v1610
        %1834 = vmatpush1.bf16.msra.mxu0 %v1609
        %1835 = vmatprep.subr.bf16.mxu0 %v1612
        %1836 = vmatpush1.bf16.msra.mxu0 %v1611
        %1837 = vmatprep.subr.bf16.mxu0 %v1614
        %1838 = vmatpush1.bf16.msra.mxu0 %v1613
        %1839 = vmatprep.subr.bf16.mxu0 %v1616
        %1840 = vmatpush1.bf16.msra.mxu0 %v1615
        %1841 = vmatprep.mubr.bf16.mxu0 %v1746
        %1842 = vmatmul.mubr.bf16.gmra.mrb[0].mxu0 %v1745
        %v1843 = vpop.f32.mrb[0].mxu0
        %v1844 = vadd.f32 0.0, %v1843
        %v1845 = vpop.f32.mrb[0].mxu0
        %v1846 = vadd.f32 0.0, %v1845
        %v1847 = vpop.f32.mrb[0].mxu0
        %v1848 = vadd.f32 0.0, %v1847
        %v1849 = vpop.f32.mrb[0].mxu0
        %v1850 = vadd.f32 0.0, %v1849
        %1851 = vmatprep.mubr.bf16.mxu0 %v1750
        %1852 = vmatmul.mubr.bf16.gmra.mrb[0].mxu0 %v1749
        %v1853 = vpop.f32.mrb[0].mxu0
        %v1854 = vadd.f32 0.0, %v1853
        %v1855 = vpop.f32.mrb[0].mxu0
        %v1856 = vadd.f32 0.0, %v1855
        %v1857 = vpop.f32.mrb[0].mxu0
        %v1858 = vadd.f32 0.0, %v1857
        %v1859 = vpop.f32.mrb[0].mxu0
        %v1860 = vadd.f32 0.0, %v1859
        %1861 = vmatprep.mubr.bf16.mxu0 %v1754
        %1862 = vmatmul.mubr.bf16.gmra.mrb[0].mxu0 %v1753
        %v1863 = vpop.f32.mrb[0].mxu0
        %v1864 = vadd.f32 0.0, %v1863
        %v1865 = vpop.f32.mrb[0].mxu0
        %v1866 = vadd.f32 0.0, %v1865
        %v1867 = vpop.f32.mrb[0].mxu0
        %v1868 = vadd.f32 0.0, %v1867
        %v1869 = vpop.f32.mrb[0].mxu0
        %v1870 = vadd.f32 0.0, %v1869
        %1871 = vmatprep.mubr.bf16.mxu0 %v1758
        %1872 = vmatmul.mubr.bf16.gmra.mrb[0].mxu0 %v1757
        %v1873 = vpop.f32.mrb[0].mxu0
        %v1874 = vadd.f32 0.0, %v1873
        %v1875 = vpop.f32.mrb[0].mxu0
        %v1876 = vadd.f32 0.0, %v1875
        %v1877 = vpop.f32.mrb[0].mxu0
        %v1878 = vadd.f32 0.0, %v1877
        %v1879 = vpop.f32.mrb[0].mxu0
        %v1880 = vadd.f32 0.0, %v1879
        %1881 = vmatprep.mubr.bf16.mxu0 %v1762
        %1882 = vmatmul.mubr.bf16.gmra.mrb[0].mxu0 %v1761
        %v1883 = vpop.f32.mrb[0].mxu0
        %v1884 = vadd.f32 0.0, %v1883
        %v1885 = vpop.f32.mrb[0].mxu0
        %v1886 = vadd.f32 0.0, %v1885
        %v1887 = vpop.f32.mrb[0].mxu0
        %v1888 = vadd.f32 0.0, %v1887
        %v1889 = vpop.f32.mrb[0].mxu0
        %v1890 = vadd.f32 0.0, %v1889
        %1891 = vmatprep.mubr.bf16.mxu0 %v1766
        %1892 = vmatmul.mubr.bf16.gmra.mrb[0].mxu0 %v1765
        %v1893 = vpop.f32.mrb[0].mxu0
        %v1894 = vadd.f32 0.0, %v1893
        %v1895 = vpop.f32.mrb[0].mxu0
        %v1896 = vadd.f32 0.0, %v1895
        %v1897 = vpop.f32.mrb[0].mxu0
        %v1898 = vadd.f32 0.0, %v1897
        %v1899 = vpop.f32.mrb[0].mxu0
        %v1900 = vadd.f32 0.0, %v1899
        %1901 = vmatprep.mubr.bf16.mxu0 %v1770
        %1902 = vmatmul.mubr.bf16.gmra.mrb[0].mxu0 %v1769
        %v1903 = vpop.f32.mrb[0].mxu0
        %v1904 = vadd.f32 0.0, %v1903
        %v1905 = vpop.f32.mrb[0].mxu0
        %v1906 = vadd.f32 0.0, %v1905
        %v1907 = vpop.f32.mrb[0].mxu0
        %v1908 = vadd.f32 0.0, %v1907
        %v1909 = vpop.f32.mrb[0].mxu0
        %v1910 = vadd.f32 0.0, %v1909
        %1911 = vmatprep.mubr.bf16.mxu0 %v1774
        %1912 = vmatmul.mubr.bf16.gmra.mrb[0].mxu0 %v1773
        %v1913 = vpop.f32.mrb[0].mxu0
        %v1914 = vadd.f32 0.0, %v1913
        %v1915 = vpop.f32.mrb[0].mxu0
        %v1916 = vadd.f32 0.0, %v1915
        %v1917 = vpop.f32.mrb[0].mxu0
        %v1918 = vadd.f32 0.0, %v1917
        %v1919 = vpop.f32.mrb[0].mxu0
        %v1920 = vadd.f32 0.0, %v1919
        %1921 = vdwg.mxu0
        %1922 = vmatprep.subr.bf16.mxu0 %v1618
        %1923 = vmatpush1.bf16.msra.mxu0 %v1617
        %1924 = vmatprep.subr.bf16.mxu0 %v1620
        %1925 = vmatpush1.bf16.msra.mxu0 %v1619
        %1926 = vmatprep.subr.bf16.mxu0 %v1622
        %1927 = vmatpush1.bf16.msra.mxu0 %v1621
        %1928 = vmatprep.subr.bf16.mxu0 %v1624
        %1929 = vmatpush1.bf16.msra.mxu0 %v1623
        %1930 = vmatprep.subr.bf16.mxu0 %v1626
        %1931 = vmatpush1.bf16.msra.mxu0 %v1625
        %1932 = vmatprep.subr.bf16.mxu0 %v1628
        %1933 = vmatpush1.bf16.msra.mxu0 %v1627
        %1934 = vmatprep.subr.bf16.mxu0 %v1630
        %1935 = vmatpush1.bf16.msra.mxu0 %v1629
        %1936 = vmatprep.subr.bf16.mxu0 %v1632
        %1937 = vmatpush1.bf16.msra.mxu0 %v1631
        %1938 = vmatprep.subr.bf16.mxu0 %v1634
        %1939 = vmatpush1.bf16.msra.mxu0 %v1633
        %1940 = vmatprep.subr.bf16.mxu0 %v1636
        %1941 = vmatpush1.bf16.msra.mxu0 %v1635
        %1942 = vmatprep.subr.bf16.mxu0 %v1638
        %1943 = vmatpush1.bf16.msra.mxu0 %v1637
        %1944 = vmatprep.subr.bf16.mxu0 %v1640
        %1945 = vmatpush1.bf16.msra.mxu0 %v1639
        %1946 = vmatprep.subr.bf16.mxu0 %v1642
        %1947 = vmatpush1.bf16.msra.mxu0 %v1641
        %1948 = vmatprep.subr.bf16.mxu0 %v1644
        %1949 = vmatpush1.bf16.msra.mxu0 %v1643
        %1950 = vmatprep.subr.bf16.mxu0 %v1646
        %1951 = vmatpush1.bf16.msra.mxu0 %v1645
        %1952 = vmatprep.subr.bf16.mxu0 %v1648
        %1953 = vmatpush1.bf16.msra.mxu0 %v1647
        %1954 = vmatprep.mubr.bf16.mxu0 %v1748
        %1955 = vmatmul.mubr.bf16.gmra.mrb[0].mxu0 %v1747
        %v1956 = vpop.f32.mrb[0].mxu0
        %v1957 = vadd.f32 %v1844, %v1956
        %v1958 = vpop.f32.mrb[0].mxu0
        %v1959 = vadd.f32 %v1846, %v1958
        %v1960 = vpop.f32.mrb[0].mxu0
        %v1961 = vadd.f32 %v1848, %v1960
        %v1962 = vpop.f32.mrb[0].mxu0
        %v1963 = vadd.f32 %v1850, %v1962
        %1964 = vmatprep.mubr.bf16.mxu0 %v1752
        %1965 = vmatmul.mubr.bf16.gmra.mrb[0].mxu0 %v1751
        %v1966 = vpop.f32.mrb[0].mxu0
        %v1967 = vadd.f32 %v1854, %v1966
        %v1968 = vpop.f32.mrb[0].mxu0
        %v1969 = vadd.f32 %v1856, %v1968
        %v1970 = vpop.f32.mrb[0].mxu0
        %v1971 = vadd.f32 %v1858, %v1970
        %v1972 = vpop.f32.mrb[0].mxu0
        %v1973 = vadd.f32 %v1860, %v1972
        %1974 = vmatprep.mubr.bf16.mxu0 %v1756
        %1975 = vmatmul.mubr.bf16.gmra.mrb[0].mxu0 %v1755
        %v1976 = vpop.f32.mrb[0].mxu0
        %v1977 = vadd.f32 %v1864, %v1976
        %v1978 = vpop.f32.mrb[0].mxu0
        %v1979 = vadd.f32 %v1866, %v1978
        %v1980 = vpop.f32.mrb[0].mxu0
        %v1981 = vadd.f32 %v1868, %v1980
        %v1982 = vpop.f32.mrb[0].mxu0
        %v1983 = vadd.f32 %v1870, %v1982
        %1984 = vmatprep.mubr.bf16.mxu0 %v1760
        %1985 = vmatmul.mubr.bf16.gmra.mrb[0].mxu0 %v1759
        %v1986 = vpop.f32.mrb[0].mxu0
        %v1987 = vadd.f32 %v1874, %v1986
        %v1988 = vpop.f32.mrb[0].mxu0
        %v1989 = vadd.f32 %v1876, %v1988
        %v1990 = vpop.f32.mrb[0].mxu0
        %v1991 = vadd.f32 %v1878, %v1990
        %v1992 = vpop.f32.mrb[0].mxu0
        %v1993 = vadd.f32 %v1880, %v1992
        %1994 = vmatprep.mubr.bf16.mxu0 %v1764
        %1995 = vmatmul.mubr.bf16.gmra.mrb[0].mxu0 %v1763
        %v1996 = vpop.f32.mrb[0].mxu0
        %v1997 = vadd.f32 %v1884, %v1996
        %v1998 = vpop.f32.mrb[0].mxu0
        %v1999 = vadd.f32 %v1886, %v1998
        %v2000 = vpop.f32.mrb[0].mxu0
        %v2001 = vadd.f32 %v1888, %v2000
        %v2002 = vpop.f32.mrb[0].mxu0
        %v2003 = vadd.f32 %v1890, %v2002
        %2004 = vmatprep.mubr.bf16.mxu0 %v1768
        %2005 = vmatmul.mubr.bf16.gmra.mrb[0].mxu0 %v1767
        %v2006 = vpop.f32.mrb[0].mxu0
        %v2007 = vadd.f32 %v1894, %v2006
        %v2008 = vpop.f32.mrb[0].mxu0
        %v2009 = vadd.f32 %v1896, %v2008
        %v2010 = vpop.f32.mrb[0].mxu0
        %v2011 = vadd.f32 %v1898, %v2010
        %v2012 = vpop.f32.mrb[0].mxu0
        %v2013 = vadd.f32 %v1900, %v2012
        %2014 = vmatprep.mubr.bf16.mxu0 %v1772
        %2015 = vmatmul.mubr.bf16.gmra.mrb[0].mxu0 %v1771
        %v2016 = vpop.f32.mrb[0].mxu0
        %v2017 = vadd.f32 %v1904, %v2016
        %v2018 = vpop.f32.mrb[0].mxu0
        %v2019 = vadd.f32 %v1906, %v2018
        %v2020 = vpop.f32.mrb[0].mxu0
        %v2021 = vadd.f32 %v1908, %v2020
        %v2022 = vpop.f32.mrb[0].mxu0
        %v2023 = vadd.f32 %v1910, %v2022
        %2024 = vmatprep.mubr.bf16.mxu0 %v1776
        %2025 = vmatmul.mubr.bf16.gmra.mrb[0].mxu0 %v1775
        %v2026 = vpop.f32.mrb[0].mxu0
        %v2027 = vadd.f32 %v1914, %v2026
        %v2028 = vpop.f32.mrb[0].mxu0
        %v2029 = vadd.f32 %v1916, %v2028
        %v2030 = vpop.f32.mrb[0].mxu0
        %v2031 = vadd.f32 %v1918, %v2030
        %v2032 = vpop.f32.mrb[0].mxu0
        %v2033 = vadd.f32 %v1920, %v2032
        %2034 = vdwg.mxu0
        %2035 = vst [vmem:[#allocation3] sm:$0xff] %v1957
        %2036 = vst [vmem:[#allocation3 + $0x8] sm:$0xff] %v1959
        %2037 = vst [vmem:[#allocation3 + $0x10] sm:$0xff] %v1961
        %2038 = vst [vmem:[#allocation3 + $0x18] sm:$0xff] %v1963
        %2039 = vst [vmem:[#allocation3 + $0x20] sm:$0xff] %v1967
        %2040 = vst [vmem:[#allocation3 + $0x28] sm:$0xff] %v1969
        %2041 = vst [vmem:[#allocation3 + $0x30] sm:$0xff] %v1971
        %2042 = vst [vmem:[#allocation3 + $0x38] sm:$0xff] %v1973
        %2043 = vst [vmem:[#allocation3 + $0x40] sm:$0xff] %v1977
        %2044 = vst [vmem:[#allocation3 + $0x48] sm:$0xff] %v1979
        %2045 = vst [vmem:[#allocation3 + $0x50] sm:$0xff] %v1981
        %2046 = vst [vmem:[#allocation3 + $0x58] sm:$0xff] %v1983
        %2047 = vst [vmem:[#allocation3 + $0x60] sm:$0xff] %v1987
        %2048 = vst [vmem:[#allocation3 + $0x68] sm:$0xff] %v1989
        %2049 = vst [vmem:[#allocation3 + $0x70] sm:$0xff] %v1991
        %2050 = vst [vmem:[#allocation3 + $0x78] sm:$0xff] %v1993
        %2051 = vst [vmem:[#allocation3 + $0x80] sm:$0xff] %v1997
        %2052 = vst [vmem:[#allocation3 + $0x88] sm:$0xff] %v1999
        %2053 = vst [vmem:[#allocation3 + $0x90] sm:$0xff] %v2001
        %2054 = vst [vmem:[#allocation3 + $0x98] sm:$0xff] %v2003
        %2055 = vst [vmem:[#allocation3 + $0xa0] sm:$0xff] %v2007
        %2056 = vst [vmem:[#allocation3 + $0xa8] sm:$0xff] %v2009
        %2057 = vst [vmem:[#allocation3 + $0xb0] sm:$0xff] %v2011
        %2058 = vst [vmem:[#allocation3 + $0xb8] sm:$0xff] %v2013
        %2059 = vst [vmem:[#allocation3 + $0xc0] sm:$0xff] %v2017
        %2060 = vst [vmem:[#allocation3 + $0xc8] sm:$0xff] %v2019
        %2061 = vst [vmem:[#allocation3 + $0xd0] sm:$0xff] %v2021
        %2062 = vst [vmem:[#allocation3 + $0xd8] sm:$0xff] %v2023
        %2063 = vst [vmem:[#allocation3 + $0xe0] sm:$0xff] %v2027
        %2064 = vst [vmem:[#allocation3 + $0xe8] sm:$0xff] %v2029
        %2065 = vst [vmem:[#allocation3 + $0xf0] sm:$0xff] %v2031
        %2066 = vst [vmem:[#allocation3 + $0xf8] sm:$0xff] %v2033
        %v2067 = vld [vmem:[%s4] sm:$0xff]
        %v2068 = vld [vmem:[%s4 + $0x8] sm:$0xff]
        %v2069 = vld [vmem:[%s4 + $0x10] sm:$0xff]
        %v2070 = vld [vmem:[%s4 + $0x18] sm:$0xff]
        %v2071 = vld [vmem:[#allocation3] sm:$0xff]
        %v2072 = vld [vmem:[#allocation3 + $0x10] sm:$0xff]
        %v2073 = vld [vmem:[#allocation3 + $0x20] sm:$0xff]
        %v2074 = vld [vmem:[#allocation3 + $0x30] sm:$0xff]
        %v2075 = vld [vmem:[#allocation3 + $0x40] sm:$0xff]
        %v2076 = vld [vmem:[#allocation3 + $0x50] sm:$0xff]
        %v2077 = vld [vmem:[#allocation3 + $0x60] sm:$0xff]
        %v2078 = vld [vmem:[#allocation3 + $0x70] sm:$0xff]
        %v2079 = vld [vmem:[#allocation3 + $0x80] sm:$0xff]
        %v2080 = vld [vmem:[#allocation3 + $0x90] sm:$0xff]
        %v2081 = vld [vmem:[#allocation3 + $0xa0] sm:$0xff]
        %v2082 = vld [vmem:[#allocation3 + $0xb0] sm:$0xff]
        %v2083 = vld [vmem:[#allocation3 + $0xc0] sm:$0xff]
        %v2084 = vld [vmem:[#allocation3 + $0xd0] sm:$0xff]
        %v2085 = vld [vmem:[#allocation3 + $0xe0] sm:$0xff]
        %v2086 = vld [vmem:[#allocation3 + $0xf0] sm:$0xff]
        %v2087 = vld [vmem:[%s292] sm:$0xff]
        %v2088 = vld [vmem:[%s292 + $0x10] sm:$0xff]
        %v2089 = vld [vmem:[%s292 + $0x20] sm:$0xff]
        %v2090 = vld [vmem:[%s292 + $0x30] sm:$0xff]
        %2092 = vset.pattern.permute.xlu0 0
        %2093 = vperm.xlu0 %2092, %v2067
        %v2094 = vpop.permute.xlu0 %2093
        %2097 = vset.pattern.permute.xlu0 0
        %2098 = vperm.xlu0 %2097, %v2068
        %v2099 = vpop.permute.xlu0 %2098
        %2102 = vset.pattern.permute.xlu0 0
        %2103 = vperm.xlu0 %2102, %v2069
        %v2104 = vpop.permute.xlu0 %2103
        %2107 = vset.pattern.permute.xlu0 0
        %2108 = vperm.xlu0 %2107, %v2070
        %v2109 = vpop.permute.xlu0 %2108
        %v2111 = vmul.f32 %v2087, %v2094
        %v2112 = vmul.f32 %v2088, %v2099
        %v2113 = vmul.f32 %v2089, %v2104
        %v2114 = vmul.f32 %v2090, %v2109
        %v2115 = vadd.f32 %v2071, %v2111
        %v2116 = vadd.f32 %v2072, %v2112
        %v2117 = vadd.f32 %v2073, %v2113
        %v2118 = vadd.f32 %v2074, %v2114
        %2119 = vset.pattern.permute.xlu0 1
        %2120 = vperm.xlu0 %2119, %v2067
        %v2121 = vpop.permute.xlu0 %2120
        %2123 = vset.pattern.permute.xlu0 1
        %2124 = vperm.xlu0 %2123, %v2068
        %v2125 = vpop.permute.xlu0 %2124
        %2127 = vset.pattern.permute.xlu0 1
        %2128 = vperm.xlu0 %2127, %v2069
        %v2129 = vpop.permute.xlu0 %2128
        %2131 = vset.pattern.permute.xlu0 1
        %2132 = vperm.xlu0 %2131, %v2070
        %v2133 = vpop.permute.xlu0 %2132
        %v2135 = vmul.f32 %v2087, %v2121
        %v2136 = vmul.f32 %v2088, %v2125
        %v2137 = vmul.f32 %v2089, %v2129
        %v2138 = vmul.f32 %v2090, %v2133
        %v2139 = vadd.f32 %v2075, %v2135
        %v2140 = vadd.f32 %v2076, %v2136
        %v2141 = vadd.f32 %v2077, %v2137
        %v2142 = vadd.f32 %v2078, %v2138
        %2143 = vset.pattern.permute.xlu0 2
        %2144 = vperm.xlu0 %2143, %v2067
        %v2145 = vpop.permute.xlu0 %2144
        %2147 = vset.pattern.permute.xlu0 2
        %2148 = vperm.xlu0 %2147, %v2068
        %v2149 = vpop.permute.xlu0 %2148
        %2151 = vset.pattern.permute.xlu0 2
        %2152 = vperm.xlu0 %2151, %v2069
        %v2153 = vpop.permute.xlu0 %2152
        %2155 = vset.pattern.permute.xlu0 2
        %2156 = vperm.xlu0 %2155, %v2070
        %v2157 = vpop.permute.xlu0 %2156
        %v2159 = vmul.f32 %v2087, %v2145
        %v2160 = vmul.f32 %v2088, %v2149
        %v2161 = vmul.f32 %v2089, %v2153
        %v2162 = vmul.f32 %v2090, %v2157
        %v2163 = vadd.f32 %v2079, %v2159
        %v2164 = vadd.f32 %v2080, %v2160
        %v2165 = vadd.f32 %v2081, %v2161
        %v2166 = vadd.f32 %v2082, %v2162
        %v2167 = vxor.u32 %v2115, 2147483648
        %v2168 = vxor.u32 %v2116, 2147483648
        %v2169 = vxor.u32 %v2117, 2147483648
        %v2170 = vxor.u32 %v2118, 2147483648
        %v2171 = vmul.f32 %v2167, 1.442695
        %v2172 = vpow.pop %v2171
        %v2173 = vmul.f32 %v2168, 1.442695
        %v2174 = vpow.pop %v2173
        %v2175 = vmul.f32 %v2169, 1.442695
        %v2176 = vpow.pop %v2175
        %v2177 = vmul.f32 %v2170, 1.442695
        %v2178 = vpow.pop %v2177
        %v2179 = vadd.f32 %v2172, 1.0
        %v2180 = vadd.f32 %v2174, 1.0
        %v2181 = vadd.f32 %v2176, 1.0
        %v2182 = vadd.f32 %v2178, 1.0
        %v2183 = vrcp.pop %v2179
        %v2184 = vmul.f32 1.0, %v2183
        %v2185 = vrcp.pop %v2180
        %v2186 = vmul.f32 1.0, %v2185
        %v2187 = vrcp.pop %v2181
        %v2188 = vmul.f32 1.0, %v2187
        %v2189 = vrcp.pop %v2182
        %v2190 = vmul.f32 1.0, %v2189
        %v2191 = vxor.u32 %v2139, 2147483648
        %v2192 = vxor.u32 %v2140, 2147483648
        %v2193 = vxor.u32 %v2141, 2147483648
        %v2194 = vxor.u32 %v2142, 2147483648
        %v2195 = vmul.f32 %v2191, 1.442695
        %v2196 = vpow.pop %v2195
        %v2197 = vmul.f32 %v2192, 1.442695
        %v2198 = vpow.pop %v2197
        %v2199 = vmul.f32 %v2193, 1.442695
        %v2200 = vpow.pop %v2199
        %v2201 = vmul.f32 %v2194, 1.442695
        %v2202 = vpow.pop %v2201
        %v2203 = vadd.f32 %v2196, 1.0
        %v2204 = vadd.f32 %v2198, 1.0
        %v2205 = vadd.f32 %v2200, 1.0
        %v2206 = vadd.f32 %v2202, 1.0
        %v2207 = vrcp.pop %v2203
        %v2208 = vmul.f32 1.0, %v2207
        %v2209 = vrcp.pop %v2204
        %v2210 = vmul.f32 1.0, %v2209
        %v2211 = vrcp.pop %v2205
        %v2212 = vmul.f32 1.0, %v2211
        %v2213 = vrcp.pop %v2206
        %v2214 = vmul.f32 1.0, %v2213
        %v2215 = vxor.u32 %v2163, 2147483648
        %v2216 = vxor.u32 %v2164, 2147483648
        %v2217 = vxor.u32 %v2165, 2147483648
        %v2218 = vxor.u32 %v2166, 2147483648
        %v2219 = vmul.f32 %v2215, 1.442695
        %v2220 = vpow.pop %v2219
        %v2221 = vmul.f32 %v2216, 1.442695
        %v2222 = vpow.pop %v2221
        %v2223 = vmul.f32 %v2217, 1.442695
        %v2224 = vpow.pop %v2223
        %v2225 = vmul.f32 %v2218, 1.442695
        %v2226 = vpow.pop %v2225
        %v2227 = vadd.f32 %v2220, 1.0
        %v2228 = vadd.f32 %v2222, 1.0
        %v2229 = vadd.f32 %v2224, 1.0
        %v2230 = vadd.f32 %v2226, 1.0
        %v2231 = vrcp.pop %v2227
        %v2232 = vmul.f32 1.0, %v2231
        %v2233 = vrcp.pop %v2228
        %v2234 = vmul.f32 1.0, %v2233
        %v2235 = vrcp.pop %v2229
        %v2236 = vmul.f32 1.0, %v2235
        %v2237 = vrcp.pop %v2230
        %v2238 = vmul.f32 1.0, %v2237
        %v2239 = vtanh.pop %v2083
        %v2240 = vtanh.pop %v2084
        %v2241 = vtanh.pop %v2085
        %v2242 = vtanh.pop %v2086
        %v2243 = vmul.f32 %v2208, %v2087
        %v2244 = vmul.f32 %v2210, %v2088
        %v2245 = vmul.f32 %v2212, %v2089
        %v2246 = vmul.f32 %v2214, %v2090
        %v2247 = vmul.f32 %v2184, %v2239
        %v2248 = vmul.f32 %v2186, %v2240
        %v2249 = vmul.f32 %v2188, %v2241
        %v2250 = vmul.f32 %v2190, %v2242
        %v2251 = vadd.f32 %v2243, %v2247
        %v2252 = vadd.f32 %v2244, %v2248
        %v2253 = vadd.f32 %v2245, %v2249
        %v2254 = vadd.f32 %v2246, %v2250
        %v2255 = vtanh.pop %v2251
        %v2256 = vtanh.pop %v2252
        %v2257 = vtanh.pop %v2253
        %v2258 = vtanh.pop %v2254
        %v2259 = vmul.f32 %v2232, %v2255
        %v2260 = vmul.f32 %v2234, %v2256
        %v2261 = vmul.f32 %v2236, %v2257
        %v2262 = vmul.f32 %v2238, %v2258
        %2263 = vst [vmem:[%s334] sm:$0xff] %v2251
        %2264 = vst [vmem:[%s334 + $0x10] sm:$0xff] %v2252
        %2265 = vst [vmem:[%s334 + $0x20] sm:$0xff] %v2253
        %2266 = vst [vmem:[%s334 + $0x30] sm:$0xff] %v2254
        %v2267 = vpack.c.bf16 %v2260, %v2259
        %v2268 = vpack.c.bf16 %v2262, %v2261
        %v2271 = vunpack.c.l.b16 %v2267
        %v2272 = vunpack.c.h.b16 %v2267
        %v2273 = vunpack.c.l.b16 %v2268
        %v2274 = vunpack.c.h.b16 %v2268
        %v2275 = vpack.c.b16 %v2271, %v2271
        %v2276 = vpack.c.b16 %v2272, %v2272
        %v2277 = vpack.c.b16 %v2273, %v2273
        %v2278 = vpack.c.b16 %v2274, %v2274
        %2283 = vst [vmem:[%s327] sm:$0xf] %v2275
        %2284 = vst [vmem:[%s327 + $0x8] sm:$0xf] %v2276
        %2285 = vst [vmem:[%s327 + $0x10] sm:$0xf] %v2277
        %2286 = vst [vmem:[%s327 + $0x18] sm:$0xf] %v2278
        %v2287 = vld [vmem:[#allocation3 + $0x8] sm:$0xff]
        %v2288 = vld [vmem:[#allocation3 + $0x18] sm:$0xff]
        %v2289 = vld [vmem:[#allocation3 + $0x28] sm:$0xff]
        %v2290 = vld [vmem:[#allocation3 + $0x38] sm:$0xff]
        %v2291 = vld [vmem:[#allocation3 + $0x48] sm:$0xff]
        %v2292 = vld [vmem:[#allocation3 + $0x58] sm:$0xff]
        %v2293 = vld [vmem:[#allocation3 + $0x68] sm:$0xff]
        %v2294 = vld [vmem:[#allocation3 + $0x78] sm:$0xff]
        %v2295 = vld [vmem:[#allocation3 + $0x88] sm:$0xff]
        %v2296 = vld [vmem:[#allocation3 + $0x98] sm:$0xff]
        %v2297 = vld [vmem:[#allocation3 + $0xa8] sm:$0xff]
        %v2298 = vld [vmem:[#allocation3 + $0xb8] sm:$0xff]
        %v2299 = vld [vmem:[#allocation3 + $0xc8] sm:$0xff]
        %v2300 = vld [vmem:[#allocation3 + $0xd8] sm:$0xff]
        %v2301 = vld [vmem:[#allocation3 + $0xe8] sm:$0xff]
        %v2302 = vld [vmem:[#allocation3 + $0xf8] sm:$0xff]
        %v2303 = vld [vmem:[%s292 + $0x8] sm:$0xff]
        %v2304 = vld [vmem:[%s292 + $0x18] sm:$0xff]
        %v2305 = vld [vmem:[%s292 + $0x28] sm:$0xff]
        %v2306 = vld [vmem:[%s292 + $0x38] sm:$0xff]
        %v2307 = vmul.f32 %v2303, %v2094
        %v2308 = vmul.f32 %v2304, %v2099
        %v2309 = vmul.f32 %v2305, %v2104
        %v2310 = vmul.f32 %v2306, %v2109
        %v2311 = vadd.f32 %v2287, %v2307
        %v2312 = vadd.f32 %v2288, %v2308
        %v2313 = vadd.f32 %v2289, %v2309
        %v2314 = vadd.f32 %v2290, %v2310
        %v2315 = vmul.f32 %v2303, %v2121
        %v2316 = vmul.f32 %v2304, %v2125
        %v2317 = vmul.f32 %v2305, %v2129
        %v2318 = vmul.f32 %v2306, %v2133
        %v2319 = vadd.f32 %v2291, %v2315
        %v2320 = vadd.f32 %v2292, %v2316
        %v2321 = vadd.f32 %v2293, %v2317
        %v2322 = vadd.f32 %v2294, %v2318
        %v2323 = vmul.f32 %v2303, %v2145
        %v2324 = vmul.f32 %v2304, %v2149
        %v2325 = vmul.f32 %v2305, %v2153
        %v2326 = vmul.f32 %v2306, %v2157
        %v2327 = vadd.f32 %v2295, %v2323
        %v2328 = vadd.f32 %v2296, %v2324
        %v2329 = vadd.f32 %v2297, %v2325
        %v2330 = vadd.f32 %v2298, %v2326
        %v2331 = vxor.u32 %v2311, 2147483648
        %v2332 = vxor.u32 %v2312, 2147483648
        %v2333 = vxor.u32 %v2313, 2147483648
        %v2334 = vxor.u32 %v2314, 2147483648
        %v2335 = vmul.f32 %v2331, 1.442695
        %v2336 = vpow.pop %v2335
        %v2337 = vmul.f32 %v2332, 1.442695
        %v2338 = vpow.pop %v2337
        %v2339 = vmul.f32 %v2333, 1.442695
        %v2340 = vpow.pop %v2339
        %v2341 = vmul.f32 %v2334, 1.442695
        %v2342 = vpow.pop %v2341
        %v2343 = vadd.f32 %v2336, 1.0
        %v2344 = vadd.f32 %v2338, 1.0
        %v2345 = vadd.f32 %v2340, 1.0
        %v2346 = vadd.f32 %v2342, 1.0
        %v2347 = vrcp.pop %v2343
        %v2348 = vmul.f32 1.0, %v2347
        %v2349 = vrcp.pop %v2344
        %v2350 = vmul.f32 1.0, %v2349
        %v2351 = vrcp.pop %v2345
        %v2352 = vmul.f32 1.0, %v2351
        %v2353 = vrcp.pop %v2346
        %v2354 = vmul.f32 1.0, %v2353
        %v2355 = vxor.u32 %v2319, 2147483648
        %v2356 = vxor.u32 %v2320, 2147483648
        %v2357 = vxor.u32 %v2321, 2147483648
        %v2358 = vxor.u32 %v2322, 2147483648
        %v2359 = vmul.f32 %v2355, 1.442695
        %v2360 = vpow.pop %v2359
        %v2361 = vmul.f32 %v2356, 1.442695
        %v2362 = vpow.pop %v2361
        %v2363 = vmul.f32 %v2357, 1.442695
        %v2364 = vpow.pop %v2363
        %v2365 = vmul.f32 %v2358, 1.442695
        %v2366 = vpow.pop %v2365
        %v2367 = vadd.f32 %v2360, 1.0
        %v2368 = vadd.f32 %v2362, 1.0
        %v2369 = vadd.f32 %v2364, 1.0
        %v2370 = vadd.f32 %v2366, 1.0
        %v2371 = vrcp.pop %v2367
        %v2372 = vmul.f32 1.0, %v2371
        %v2373 = vrcp.pop %v2368
        %v2374 = vmul.f32 1.0, %v2373
        %v2375 = vrcp.pop %v2369
        %v2376 = vmul.f32 1.0, %v2375
        %v2377 = vrcp.pop %v2370
        %v2378 = vmul.f32 1.0, %v2377
        %v2379 = vxor.u32 %v2327, 2147483648
        %v2380 = vxor.u32 %v2328, 2147483648
        %v2381 = vxor.u32 %v2329, 2147483648
        %v2382 = vxor.u32 %v2330, 2147483648
        %v2383 = vmul.f32 %v2379, 1.442695
        %v2384 = vpow.pop %v2383
        %v2385 = vmul.f32 %v2380, 1.442695
        %v2386 = vpow.pop %v2385
        %v2387 = vmul.f32 %v2381, 1.442695
        %v2388 = vpow.pop %v2387
        %v2389 = vmul.f32 %v2382, 1.442695
        %v2390 = vpow.pop %v2389
        %v2391 = vadd.f32 %v2384, 1.0
        %v2392 = vadd.f32 %v2386, 1.0
        %v2393 = vadd.f32 %v2388, 1.0
        %v2394 = vadd.f32 %v2390, 1.0
        %v2395 = vrcp.pop %v2391
        %v2396 = vmul.f32 1.0, %v2395
        %v2397 = vrcp.pop %v2392
        %v2398 = vmul.f32 1.0, %v2397
        %v2399 = vrcp.pop %v2393
        %v2400 = vmul.f32 1.0, %v2399
        %v2401 = vrcp.pop %v2394
        %v2402 = vmul.f32 1.0, %v2401
        %v2403 = vtanh.pop %v2299
        %v2404 = vtanh.pop %v2300
        %v2405 = vtanh.pop %v2301
        %v2406 = vtanh.pop %v2302
        %v2407 = vmul.f32 %v2372, %v2303
        %v2408 = vmul.f32 %v2374, %v2304
        %v2409 = vmul.f32 %v2376, %v2305
        %v2410 = vmul.f32 %v2378, %v2306
        %v2411 = vmul.f32 %v2348, %v2403
        %v2412 = vmul.f32 %v2350, %v2404
        %v2413 = vmul.f32 %v2352, %v2405
        %v2414 = vmul.f32 %v2354, %v2406
        %v2415 = vadd.f32 %v2407, %v2411
        %v2416 = vadd.f32 %v2408, %v2412
        %v2417 = vadd.f32 %v2409, %v2413
        %v2418 = vadd.f32 %v2410, %v2414
        %v2419 = vtanh.pop %v2415
        %v2420 = vtanh.pop %v2416
        %v2421 = vtanh.pop %v2417
        %v2422 = vtanh.pop %v2418
        %v2423 = vmul.f32 %v2396, %v2419
        %v2424 = vmul.f32 %v2398, %v2420
        %v2425 = vmul.f32 %v2400, %v2421
        %v2426 = vmul.f32 %v2402, %v2422
        %2427 = vst [vmem:[%s334 + $0x8] sm:$0xff] %v2415
        %2428 = vst [vmem:[%s334 + $0x18] sm:$0xff] %v2416
        %2429 = vst [vmem:[%s334 + $0x28] sm:$0xff] %v2417
        %2430 = vst [vmem:[%s334 + $0x38] sm:$0xff] %v2418
        %v2431 = vpack.c.bf16 %v2424, %v2423
        %v2432 = vpack.c.bf16 %v2426, %v2425
        %v2435 = vunpack.c.l.b16 %v2431
        %v2436 = vunpack.c.h.b16 %v2431
        %v2437 = vunpack.c.l.b16 %v2432
        %v2438 = vunpack.c.h.b16 %v2432
        %v2439 = vpack.c.b16 %v2435, %v2435
        %v2440 = vpack.c.b16 %v2436, %v2436
        %v2441 = vpack.c.b16 %v2437, %v2437
        %v2442 = vpack.c.b16 %v2438, %v2438
        %2447 = vst [vmem:[%s327 + $0x4] sm:$0xf] %v2439
        %2448 = vst [vmem:[%s327 + $0xc] sm:$0xf] %v2440
        %2449 = vst [vmem:[%s327 + $0x14] sm:$0xf] %v2441
        %2450 = vst [vmem:[%s327 + $0x1c] sm:$0xf] %v2442
        %s2451 = sand.u32 %s153, 1
        %s2452 = scalar_lea.sflag [#allocation6], %s2451
        %s2453 = sand.u32 %s153, 1
        %s2454 = smul.addr %s2453, 32
        %s2455 = scalar_lea.vmem [#allocation10], %s2454
        %s2456 = sand.u32 %s179, 1
        %s2457 = scalar_lea.sflag [#allocation12], %s2456
        %s2458 = sand.u32 %s179, 1
        %s2459 = smul.addr %s2458, 64
        %s2460 = scalar_lea.vmem [#allocation11], %s2459
        // Predicated region
        $region53: #{tpu_custom_call.1} parent=39 // pred_check
          %p2461 = pneg %p163
        $region54: #{tpu_custom_call.1} parent=39 // pred_check_branch
          %2463 = sbr.rel (%p2461) target = $region56
        $region55: #{tpu_custom_call.1} parent=39 // pred_region
          %s2465 = ssub.s32 512, 512
          %2466 = vsyncadd %s2452, %s2465
          %s2467 = smul.addr %s30, 8
          %s2468 = smul.addr %s2467, 64
          %s2469 = scalar_lea.hbm %s5, %s2468
          %s2470 = sshll.u32 %s2455, 4
          %s2471 = int_to_ptr.vmem [resolvable:$true] %s2470
          %2476 = dma.vmem_to_hbm [thread:$0]  %s2471, 512, %s2469, %s2452, 128, 128, 8
        $region56: #{tpu_custom_call.1} parent=39 // pred_fallthru
          _
        // Predicated region
        $region57: #{tpu_custom_call.1} parent=39 // pred_check
          %p2477 = pneg %p189
        $region58: #{tpu_custom_call.1} parent=39 // pred_check_branch
          %2479 = sbr.rel (%p2477) target = $region60
        $region59: #{tpu_custom_call.1} parent=39 // pred_region
          %s2481 = ssub.s32 1024, 1024
          %2482 = vsyncadd %s2457, %s2481
          %s2483 = smul.addr %s30, 8
          %s2484 = smul.addr %s2483, 128
          %s2485 = scalar_lea.hbm %s6, %s2484
          %s2486 = sshll.u32 %s2460, 4
          %s2487 = int_to_ptr.vmem [resolvable:$true] %s2486
          %2492 = dma.vmem_to_hbm [thread:$0]  %s2487, 1024, %s2485, %s2457, 256, 256, 16
        $region60: #{tpu_custom_call.1} parent=39 // pred_fallthru
          _
      $region40: #{tpu_custom_call.1} parent=5 // pred_fallthru
        _
      %p2493 = scmp.le.s32.totalorder 2, %s25
      // Predicated region
      $region61: #{tpu_custom_call.1} parent=5 // pred_check
        %p2494 = pneg %p2493
      $region62: #{tpu_custom_call.1} parent=5 // pred_check_branch
        %2496 = sbr.rel (%p2494) target = $region64
      $region63: #{tpu_custom_call.1} parent=5 // pred_region
        %s2497 = ssub.s32 %s25, 2
        // Predicated region
        $region65: #{tpu_custom_call.1} parent=63 // pred_check
          %p2498 = pneg %p169
        $region66: #{tpu_custom_call.1} parent=63 // pred_check_branch
          %2500 = sbr.rel (%p2498) target = $region68
        $region67: #{tpu_custom_call.1} parent=63 // pred_region
          %s2501 = sand.u32 %s154, 1
          %s2502 = scalar_lea.sflag [#allocation6], %s2501
          %s2503 = sand.u32 %s154, 1
          %s2504 = smul.addr %s2503, 32
          %s2505 = scalar_lea.vmem [#allocation10], %s2504
          %2506 = dma.done %s2502, 512
        $region68: #{tpu_custom_call.1} parent=63 // pred_fallthru
          _
        // Predicated region
        $region69: #{tpu_custom_call.1} parent=63 // pred_check
          %p2507 = pneg %p195
        $region70: #{tpu_custom_call.1} parent=63 // pred_check_branch
          %2509 = sbr.rel (%p2507) target = $region72
        $region71: #{tpu_custom_call.1} parent=63 // pred_region
          %s2510 = sand.u32 %s180, 1
          %s2511 = scalar_lea.sflag [#allocation12], %s2510
          %s2512 = sand.u32 %s180, 1
          %s2513 = smul.addr %s2512, 64
          %s2514 = scalar_lea.vmem [#allocation11], %s2513
          %2515 = dma.done %s2511, 1024
        $region72: #{tpu_custom_call.1} parent=63 // pred_fallthru
          _
      $region64: #{tpu_custom_call.1} parent=5 // pred_fallthru
        _
    $region6: #{tpu_custom_call.1} parent=1 // loop_footer
      %s29 = sadd.s32 1, %s25
    $region7: #{tpu_custom_call.1} parent=1 // loop_footer_branch
      %24 = sbr.rel target = $region3
    $region8: #{tpu_custom_call.1} parent=1 // loop_exit
      _
    %2516 = vsyncpa [#allocation5], 1
    %s2517 = scalar_lea.sflag [#allocation5], 1
    %2518 = vsyncpa %s2517, 1
    %2519 = vsyncpa [#allocation8], 1
    %s2520 = scalar_lea.sflag [#allocation8], 1
    %2521 = vsyncpa %s2520, 1
    %2522 = vsyncpa [#allocation6], 1
    %s2523 = scalar_lea.sflag [#allocation6], 1
    %2524 = vsyncpa %s2523, 1
    %2525 = vsyncpa [#allocation12], 1
    %s2526 = scalar_lea.sflag [#allocation12], 1
    %2527 = vsyncpa %s2526, 1

</llo_original>
